<compile_context>
chip_gen: v7x
topology: tpu7x:2x2x1
jax: 0.10.0
libtpu: 0.0.40
codegen_flags: <defaults>
</compile_context>

<pallas_src>
import math
import numpy as np
import jax
import jax.numpy as jnp
from jax.experimental import pallas as pl
from jax.experimental.pallas import tpu as pltpu

# ----------------------- small config (mirrors TestLaneATT.__init__) -----------------
S = 8                      # n_offsets           (72  in the reference)
IMG_W = 64                 #                     (640 in the reference)
IMG_H = 32                 #                     (360 in the reference)
STRIDE = 4
FMAP_H = IMG_H // STRIDE   # 8
FMAP_W = IMG_W // STRIDE   # 16
ANCHOR_FEAT_CH = 16        #                     (64  in the reference)
BACKBONE_CH = 16           #                     (64  in the reference)
LATERAL_N = 2              #                     (72  in the reference)
BOTTOM_N = 2               #                     (128 in the reference)
LEFT_ANGLES = [72., 60., 49., 39., 30., 22.]
RIGHT_ANGLES = [108., 120., 131., 141., 150., 158.]
BOTTOM_ANGLES = [165., 150., 141., 131., 120., 108., 100., 90., 80., 72., 60., 49., 39., 30., 15.]
D_FEAT = ANCHOR_FEAT_CH * FMAP_H     # 128
N_OUT = 5 + S                        # 13


# ----------------------- anchor generation (parameter setup, plain numpy) ------------
def _generate_anchor(start, angle_deg, ys, img_w):
    anchor = np.zeros(5 + len(ys), dtype=np.float64)
    angle = angle_deg * math.pi / 180.0
    sx, sy = start
    anchor[2] = 1.0 - sy
    anchor[3] = sx
    anchor[5:] = (sx + (1.0 - ys - 1.0 + sy) / math.tan(angle)) * img_w
    return anchor


def _generate_side_anchors(angles, nb_origins, ys, cut_ys, img_w, x=None, y=None):
    if x is None and y is not None:
        starts = [(xx, y) for xx in np.linspace(1.0, 0.0, num=nb_origins)]
    elif x is not None and y is None:
        starts = [(x, yy) for yy in np.linspace(1.0, 0.0, num=nb_origins)]
    else:
        raise ValueError("define exactly one of x or y")
    n_anchors = nb_origins * len(angles)
    anchors = np.zeros((n_anchors, 5 + len(ys)), dtype=np.float64)
    anchors_cut = np.zeros((n_anchors, 5 + len(cut_ys)), dtype=np.float64)
    for i, start in enumerate(starts):
        for j, ang in enumerate(angles):
            k = i * len(angles) + j
            anchors[k] = _generate_anchor(start, ang, ys, img_w)
            anchors_cut[k] = _generate_anchor(start, ang, cut_ys, img_w)
    return anchors, anchors_cut


def generate_anchors():
    anchor_ys = np.linspace(1.0, 0.0, num=S)
    cut_ys = np.linspace(1.0, 0.0, num=FMAP_H)
    left, left_cut = _generate_side_anchors(LEFT_ANGLES, LATERAL_N, anchor_ys, cut_ys, IMG_W, x=0.0)
    right, right_cut = _generate_side_anchors(RIGHT_ANGLES, LATERAL_N, anchor_ys, cut_ys, IMG_W, x=1.0)
    bottom, bottom_cut = _generate_side_anchors(BOTTOM_ANGLES, BOTTOM_N, anchor_ys, cut_ys, IMG_W, y=1.0)
    anchors = np.concatenate([left, bottom, right], axis=0).astype(np.float32)
    anchors_cut = np.concatenate([left_cut, bottom_cut, right_cut], axis=0).astype(np.float32)
    return anchors, anchors_cut


def compute_anchor_cut_indices(anchors_cut):
    # matches TestLaneATT.compute_anchor_cut_indices; x-index is channel-independent
    unclamped = np.flip(np.round(anchors_cut[:, 5:].astype(np.float64) / STRIDE), axis=1).astype(np.int64)
    cut_xs = np.clip(unclamped, 0, FMAP_W - 1).astype(np.int32)
    invalid = (unclamped < 0) | (unclamped > FMAP_W)   # '> fmap_w' exactly as in the reference
    return cut_xs, invalid


# ----------------------- trace-time packing of all static operands -------------------
def pack_params(conv_w, conv_b, attn_w, attn_b, cls_w, cls_b, reg_w, reg_b,
                anchors_np, cut_xs, invalid):
    C, H, W = ANCHOR_FEAT_CH, FMAP_H, FMAP_W
    D = C * H
    P = anchors_np.shape[0]
    conv_w = np.asarray(conv_w, np.float32); conv_b = np.asarray(conv_b, np.float32)
    attn_w = np.asarray(attn_w, np.float32); attn_b = np.asarray(attn_b, np.float32)
    cls_w = np.asarray(cls_w, np.float32);   cls_b = np.asarray(cls_b, np.float32)
    reg_w = np.asarray(reg_w, np.float32);   reg_b = np.asarray(reg_b, np.float32)

    # kernel feature-lane layout d' = h*C + c   <->   torch layout d = c*H + h
    dp = np.arange(D)
    perm = (dp % C) * H + (dp // C)

    # 1x1 conv folded into H-tiled weights feeding the block-diagonal expansion
    wconv_rep = np.tile(conv_w.T, (1, H))                        # (Cin, D)
    bconv_rep = np.tile(conv_b, H)[None, :]                      # (1, D)
    hw = np.arange(H * W)
    blockmask = ((hw[:, None] // W) == (dp[None, :] // C)).astype(np.float32)   # (H*W, D)

    # one-hot ROI selection (clamped x indices, validity mask folded in)
    valid = (~invalid).astype(np.float32)                        # (P, H)
    sel = np.zeros((P, H * W), np.float32)
    rows = np.repeat(np.arange(P), H)
    cols = (np.arange(H)[None, :] * W + cut_xs).reshape(-1)
    sel[rows, cols] = valid.reshape(-1)

    # attention layer, rows permuted to kernel layout, padded to P columns
    wattn_pad = np.zeros((D, P), np.float32)
    wattn_pad[:, :P - 1] = attn_w[:, perm].T
    battn_pad = np.zeros((1, P), np.float32)
    battn_pad[0, :P - 1] = attn_b
    battn_pad[0, P - 1] = -1e30            # exp underflows to 0 -> softmax unchanged

    # cls/reg fused into one (2D, 5+S) matrix writing directly into output columns
    wout = np.zeros((2 * D, N_OUT), np.float32)
    wout[:D, 0:2] = cls_w[:, :D][:, perm].T        # acts on attention features
    wout[:D, 4:] = reg_w[:, :D][:, perm].T
    wout[D:, 0:2] = cls_w[:, D:][:, perm].T        # acts on raw anchor features
    wout[D:, 4:] = reg_w[:, D:][:, perm].T
    bout = np.zeros((1, N_OUT), np.float32)
    bout[0, 0:2] = cls_b
    bout[0, 4:] = reg_b

    # anchors template: cols 0:2 are overwritten by cls in the reference -> zero them
    anch = np.array(anchors_np, np.float32)
    anch[:, 0:2] = 0.0

    return dict(
        wconv_rep=jnp.asarray(wconv_rep, jnp.bfloat16),
        bconv_rep=jnp.asarray(bconv_rep, jnp.float32),
        blockmask=jnp.asarray(blockmask, jnp.float32),
        sel=jnp.asarray(sel, jnp.bfloat16),
        wattn_pad=jnp.asarray(wattn_pad, jnp.bfloat16),
        battn_pad=jnp.asarray(battn_pad, jnp.float32),
        wout=jnp.asarray(wout, jnp.bfloat16),
        bout=jnp.asarray(bout, jnp.float32),
        anchors_tmpl=jnp.asarray(anch, jnp.float32),
    )


# ----------------------- the single fused Pallas kernel ------------------------------
def _laneatt_fused_kernel(x_ref, wconv_ref, bconv_ref, mask_ref, sel_ref,
                          wattn_ref, battn_ref, wout_ref, bout_ref, anch_ref,
                          out_ref):
    # 1x1 conv (folded into H-tiled weights) -> block-diagonal feature expansion
    x2d = x_ref[0]                                            # (Cin, H*W) f32, NCHW
    x_t = x2d.T.astype(jnp.bfloat16)                          # (H*W, Cin)
    conv = jnp.dot(x_t, wconv_ref[...],
                   preferred_element_type=jnp.float32)        # (H*W, H*Cout)
    bigfeat = ((conv + bconv_ref[...]) * mask_ref[...]).astype(jnp.bfloat16)

    # static one-hot ROI gather (validity folded into sel): one MXU matmul
    feats = jnp.dot(sel_ref[...], bigfeat,
                    preferred_element_type=jnp.float32).astype(jnp.bfloat16)   # (P, D)

    # attention: padded P-th column carries a -1e30 bias -> softmax weight exactly 0
    scores = jnp.dot(feats, wattn_ref[...],
                     preferred_element_type=jnp.float32) + battn_ref[...]      # (P, P)
    m = jnp.max(scores, axis=-1, keepdims=True)
    e = jnp.exp(scores - m)
    attn = e / jnp.sum(e, axis=-1, keepdims=True)             # == [softmax(P-1) | 0]
    P = attn.shape[0]
    pad_l = jnp.concatenate([jnp.zeros((P, 1), jnp.float32), attn[:, :-1]], axis=1)
    row = jax.lax.broadcasted_iota(jnp.int32, (P, P), 0)
    col = jax.lax.broadcasted_iota(jnp.int32, (P, P), 1)
    attn_full = jnp.where(col < row, attn, jnp.where(col > row, pad_l, 0.0))

    # attention features + fused cls/reg head; output assembled into anchor template
    att_feats = jnp.dot(attn_full.astype(jnp.bfloat16), feats,
                        preferred_element_type=jnp.float32).astype(jnp.bfloat16)  # (P, D)
    head = jnp.concatenate([att_feats, feats], axis=-1)       # (P, 2D)
    out = (anch_ref[...]
           + jnp.dot(head, wout_ref[...], preferred_element_type=jnp.float32)
           + bout_ref[...])                                   # (P, 5+S)
    out_ref[...] = out[None]


def laneatt_forward(x_nchw, packed):
    B, Cin, H, W = x_nchw.shape
    HW = H * W
    x3 = x_nchw.reshape(B, Cin, HW)                           # pure reshape, no transpose
    P, ncols = packed["anchors_tmpl"].shape
    D = packed["wattn_pad"].shape[0]
    return pl.pallas_call(
        _laneatt_fused_kernel,
        out_shape=jax.ShapeDtypeStruct((B, P, ncols), jnp.float32),
        grid_spec=pltpu.PrefetchScalarGridSpec(
            num_scalar_prefetch=0,
            grid=(B,),
            in_specs=[
                pl.BlockSpec((1, Cin, HW), lambda b: (b, 0, 0)),    # x (NCHW, flat spatial)
                pl.BlockSpec((Cin, D), lambda b: (0, 0)),           # wconv_rep
                pl.BlockSpec((1, D), lambda b: (0, 0)),             # bconv_rep
                pl.BlockSpec((HW, D), lambda b: (0, 0)),            # blockmask
                pl.BlockSpec((P, HW), lambda b: (0, 0)),            # sel (one-hot gather)
                pl.BlockSpec((D, P), lambda b: (0, 0)),             # wattn (padded)
                pl.BlockSpec((1, P), lambda b: (0, 0)),             # battn (padded)
                pl.BlockSpec((2 * D, ncols), lambda b: (0, 0)),     # fused cls/reg weights
                pl.BlockSpec((1, ncols), lambda b: (0, 0)),         # fused cls/reg bias
                pl.BlockSpec((P, ncols), lambda b: (0, 0)),         # anchors template
            ],
            out_specs=pl.BlockSpec((1, P, ncols), lambda b: (b, 0, 0))),
        compiler_params=pltpu.CompilerParams(dimension_semantics=("parallel",)),
    )(x3, packed["wconv_rep"], packed["bconv_rep"], packed["blockmask"],
      packed["sel"], packed["wattn_pad"], packed["battn_pad"],
      packed["wout"], packed["bout"], packed["anchors_tmpl"])


# ----------------------- pure-JAX f32 reference (for the correctness check) ----------
def reference_forward(x, raw, anchors, cut_xs, invalid):
    feat = jnp.einsum("bchw,oc->bohw", x, raw["conv_w"]) + raw["conv_b"][None, :, None, None]
    B, C, H, W = feat.shape
    P = anchors.shape[0]
    y_idx = jnp.arange(H)[None, :]
    gathered = feat[:, :, y_idx, cut_xs] * jnp.asarray(~invalid, feat.dtype)[None, None]
    feats = jnp.transpose(gathered, (0, 2, 1, 3)).reshape(B, P, C * H)
    flat = feats.reshape(B * P, C * H)
    scores = flat @ raw["attn_w"].T + raw["attn_b"]
    attn = jax.nn.softmax(scores, axis=1).reshape(B, P, P - 1)
    rowi = jnp.arange(P)[:, None]
    colj = jnp.arange(P)[None, :]
    k = jnp.clip(jnp.where(colj > rowi, colj - 1, colj), 0, P - 2)
    attn_mat = jnp.take_along_axis(attn, jnp.broadcast_to(k[None], (B, P, P)), axis=2)
    attn_mat = jnp.where((colj == rowi)[None], 0.0, attn_mat)
    att_feats = jnp.einsum("bij,bjd->bid", attn_mat, feats)
    cat = jnp.concatenate([att_feats, feats], axis=-1).reshape(B * P, 2 * C * H)
    cls = (cat @ raw["cls_w"].T + raw["cls_b"]).reshape(B, P, 2)
    reg = (cat @ raw["reg_w"].T + raw["reg_b"]).reshape(B, P, S + 1)
    rp = jnp.zeros((B, P, 5 + S), jnp.float32) + anchors[None]
    rp = rp.at[:, :, :2].set(cls)
    rp = rp.at[:, :, 4:].add(reg)
    return rp


if __name__ == "__main__":
    anchors_np, anchors_cut_np = generate_anchors()
    cut_xs_np, invalid_np = compute_anchor_cut_indices(anchors_cut_np)
    P = anchors_np.shape[0]

    B = 2
    key = jax.random.PRNGKey(0)
    kx, k1, k2, k3, k4 = jax.random.split(key, 5)

    # TODO(synk): resnet122_cifar backbone is undefined in the reference file; the kernel
    # consumes the stride-4 backbone feature map directly (NCHW), same channels as conv1's input.
    x = jax.random.normal(kx, (B, BACKBONE_CH, FMAP_H, FMAP_W), dtype=jnp.float32)

    # deterministic init matching initialize_layer: normal(0, 0.001) weights, zero biases
    conv_w = 0.001 * jax.random.normal(k1, (ANCHOR_FEAT_CH, BACKBONE_CH), jnp.float32)
    conv_b = jnp.zeros((ANCHOR_FEAT_CH,), jnp.float32)
    attn_w = 0.001 * jax.random.normal(k2, (P - 1, D_FEAT), jnp.float32)
    attn_b = jnp.zeros((P - 1,), jnp.float32)
    cls_w = 0.001 * jax.random.normal(k3, (2, 2 * D_FEAT), jnp.float32)
    cls_b = jnp.zeros((2,), jnp.float32)
    reg_w = 0.001 * jax.random.normal(k4, (S + 1, 2 * D_FEAT), jnp.float32)
    reg_b = jnp.zeros((S + 1,), jnp.float32)

    raw = dict(conv_w=conv_w, conv_b=conv_b, attn_w=attn_w, attn_b=attn_b,
               cls_w=cls_w, cls_b=cls_b, reg_w=reg_w, reg_b=reg_b)

    packed = pack_params(conv_w, conv_b, attn_w, attn_b, cls_w, cls_b, reg_w, reg_b,
                         anchors_np, cut_xs_np, invalid_np)

    anchors = jnp.asarray(anchors_np)
    cut_xs = jnp.asarray(cut_xs_np)
    invalid = jnp.asarray(invalid_np)

    out = jax.block_until_ready(laneatt_forward(x, packed))
    ref = jax.block_until_ready(reference_forward(x, raw, anchors, cut_xs, invalid))
    assert out.shape == (B, P, 5 + S), out.shape
    np.testing.assert_allclose(np.asarray(out), np.asarray(ref), rtol=1e-3, atol=1e-3)
    print("KERNEL_OK")
</pallas_src>

<mosaic_0001>
module attributes {stable_mosaic.version = 11 : i64} {
  func.func @_laneatt_fused_kernel(%arg0: i32, %arg1: memref<1x16x128xf32, #tpu.memory_space<vmem>>, %arg2: memref<16x128xbf16, #tpu.memory_space<vmem>>, %arg3: memref<1x128xf32, #tpu.memory_space<vmem>>, %arg4: memref<128x128xf32, #tpu.memory_space<vmem>>, %arg5: memref<54x128xbf16, #tpu.memory_space<vmem>>, %arg6: memref<128x54xbf16, #tpu.memory_space<vmem>>, %arg7: memref<1x54xf32, #tpu.memory_space<vmem>>, %arg8: memref<256x13xbf16, #tpu.memory_space<vmem>>, %arg9: memref<1x13xf32, #tpu.memory_space<vmem>>, %arg10: memref<54x13xf32, #tpu.memory_space<vmem>>, %arg11: memref<1x54x13xf32, #tpu.memory_space<vmem>>) attributes {dimension_semantics = [#tpu.dimension_semantics<parallel>], iteration_bounds = array<i64: 2>, scalar_prefetch = 0 : i64, scratch_operands = 0 : i64, tpu.core_type = #tpu.core_type<tc>, window_params = [{transform_indices = @transform_0, window_bounds = array<i64: 1, 16, 128>}, {pipeline_mode = #tpu.pipeline_mode<synchronous>, transform_indices = @transform_1, window_bounds = array<i64: 16, 128>}, {pipeline_mode = #tpu.pipeline_mode<synchronous>, transform_indices = @transform_2, window_bounds = array<i64: 1, 128>}, {pipeline_mode = #tpu.pipeline_mode<synchronous>, transform_indices = @transform_3, window_bounds = array<i64: 128, 128>}, {pipeline_mode = #tpu.pipeline_mode<synchronous>, transform_indices = @transform_4, window_bounds = array<i64: 54, 128>}, {pipeline_mode = #tpu.pipeline_mode<synchronous>, transform_indices = @transform_5, window_bounds = array<i64: 128, 54>}, {pipeline_mode = #tpu.pipeline_mode<synchronous>, transform_indices = @transform_6, window_bounds = array<i64: 1, 54>}, {pipeline_mode = #tpu.pipeline_mode<synchronous>, transform_indices = @transform_7, window_bounds = array<i64: 256, 13>}, {pipeline_mode = #tpu.pipeline_mode<synchronous>, transform_indices = @transform_8, window_bounds = array<i64: 1, 13>}, {pipeline_mode = #tpu.pipeline_mode<synchronous>, transform_indices = @transform_9, window_bounds = array<i64: 54, 13>}, {transform_indices = @transform_10, window_bounds = array<i64: 1, 54, 13>}]} {
    %c0 = arith.constant 0 : index
    %c0_0 = arith.constant 0 : index
    %c0_1 = arith.constant 0 : index
    %0 = vector.load %arg1[%c0, %c0_0, %c0_1] : memref<1x16x128xf32, #tpu.memory_space<vmem>>, vector<1x16x128xf32>
    %1 = vector.shape_cast %0 : vector<1x16x128xf32> to vector<16x128xf32>
    %2 = tpu.transpose %1, [1, 0] : vector<16x128xf32> -> vector<128x16xf32>
    %3 = arith.truncf %2 : vector<128x16xf32> to vector<128x16xbf16>
    %c0_2 = arith.constant 0 : index
    %c0_3 = arith.constant 0 : index
    %4 = vector.load %arg2[%c0_2, %c0_3] : memref<16x128xbf16, #tpu.memory_space<vmem>>, vector<16x128xbf16>
    %cst = arith.constant dense<0.000000e+00> : vector<128x128xf32>
    %5 = tpu.matmul %3, %4, %cst {dimension_numbers = #tpu.dot_dimension_numbers<[1], [0], [0], [1], [0, 0, 1, 1], [], []>} : vector<128x16xbf16>, vector<16x128xbf16>, vector<128x128xf32> -> vector<128x128xf32>
    %c0_4 = arith.constant 0 : index
    %c0_5 = arith.constant 0 : index
    %6 = vector.load %arg3[%c0_4, %c0_5] : memref<1x128xf32, #tpu.memory_space<vmem>>, vector<1x128xf32>
    %7 = vector.broadcast %6 : vector<1x128xf32> to vector<128x128xf32>
    %8 = arith.addf %5, %7 : vector<128x128xf32>
    %c0_6 = arith.constant 0 : index
    %c0_7 = arith.constant 0 : index
    %9 = vector.load %arg4[%c0_6, %c0_7] : memref<128x128xf32, #tpu.memory_space<vmem>>, vector<128x128xf32>
    %10 = arith.mulf %8, %9 : vector<128x128xf32>
    %11 = arith.truncf %10 : vector<128x128xf32> to vector<128x128xbf16>
    %c0_8 = arith.constant 0 : index
    %c0_9 = arith.constant 0 : index
    %12 = vector.load %arg5[%c0_8, %c0_9] : memref<54x128xbf16, #tpu.memory_space<vmem>>, vector<54x128xbf16>
    %cst_10 = arith.constant dense<0.000000e+00> : vector<54x128xf32>
    %13 = tpu.matmul %12, %11, %cst_10 {dimension_numbers = #tpu.dot_dimension_numbers<[1], [0], [0], [1], [0, 0, 1, 1], [], []>} : vector<54x128xbf16>, vector<128x128xbf16>, vector<54x128xf32> -> vector<54x128xf32>
    %14 = arith.truncf %13 : vector<54x128xf32> to vector<54x128xbf16>
    %c0_11 = arith.constant 0 : index
    %c0_12 = arith.constant 0 : index
    %15 = vector.load %arg6[%c0_11, %c0_12] : memref<128x54xbf16, #tpu.memory_space<vmem>>, vector<128x54xbf16>
    %cst_13 = arith.constant dense<0.000000e+00> : vector<54x54xf32>
    %16 = tpu.matmul %14, %15, %cst_13 {dimension_numbers = #tpu.dot_dimension_numbers<[1], [0], [0], [1], [0, 0, 1, 1], [], []>} : vector<54x128xbf16>, vector<128x54xbf16>, vector<54x54xf32> -> vector<54x54xf32>
    %c0_14 = arith.constant 0 : index
    %c0_15 = arith.constant 0 : index
    %17 = vector.load %arg7[%c0_14, %c0_15] : memref<1x54xf32, #tpu.memory_space<vmem>>, vector<1x54xf32>
    %18 = vector.broadcast %17 : vector<1x54xf32> to vector<54x54xf32>
    %19 = arith.addf %16, %18 : vector<54x54xf32>
    %cst_16 = arith.constant dense<0xFF800000> : vector<54xf32>
    %20 = vector.multi_reduction <maximumf>, %19, %cst_16 [1] : vector<54x54xf32> to vector<54xf32>
    %21 = vector.shape_cast %20 : vector<54xf32> to vector<54x1xf32>
    %22 = vector.broadcast %21 : vector<54x1xf32> to vector<54x54xf32>
    %23 = arith.subf %19, %22 : vector<54x54xf32>
    %24 = math.exp %23 : vector<54x54xf32>
    %cst_17 = arith.constant dense<0.000000e+00> : vector<54xf32>
    %25 = vector.multi_reduction <add>, %24, %cst_17 [1] : vector<54x54xf32> to vector<54xf32>
    %26 = vector.shape_cast %25 : vector<54xf32> to vector<54x1xf32>
    %27 = vector.broadcast %26 : vector<54x1xf32> to vector<54x54xf32>
    %28 = arith.divf %24, %27 : vector<54x54xf32>
    %cst_18 = arith.constant 0.000000e+00 : f32
    %29 = vector.broadcast %cst_18 : f32 to vector<54x1xf32>
    %30 = vector.extract_strided_slice %28 {offsets = [0, 0], sizes = [54, 53], strides = [1, 1]} : vector<54x54xf32> to vector<54x53xf32>
    %31 = tpu.concatenate %29, %30 in 1 : vector<54x1xf32>, vector<54x53xf32> -> vector<54x54xf32>
    %32 = tpu.iota {dimensions = array<i32: 0>} : vector<54x54xi32>
    %33 = tpu.iota {dimensions = array<i32: 1>} : vector<54x54xi32>
    %34 = arith.cmpi slt, %33, %32 : vector<54x54xi32>
    %35 = arith.cmpi sgt, %33, %32 : vector<54x54xi32>
    %cst_19 = arith.constant 0.000000e+00 : f32
    %36 = vector.broadcast %cst_19 : f32 to vector<54x54xf32>
    %37 = arith.select %35, %31, %36 : vector<54x54xi1>, vector<54x54xf32>
    %38 = arith.select %34, %28, %37 : vector<54x54xi1>, vector<54x54xf32>
    %39 = arith.truncf %38 : vector<54x54xf32> to vector<54x54xbf16>
    %cst_20 = arith.constant dense<0.000000e+00> : vector<54x128xf32>
    %40 = tpu.matmul %39, %14, %cst_20 {dimension_numbers = #tpu.dot_dimension_numbers<[1], [0], [0], [1], [0, 0, 1, 1], [], []>} : vector<54x54xbf16>, vector<54x128xbf16>, vector<54x128xf32> -> vector<54x128xf32>
    %41 = arith.truncf %40 : vector<54x128xf32> to vector<54x128xbf16>
    %42 = tpu.concatenate %41, %14 in 1 : vector<54x128xbf16>, vector<54x128xbf16> -> vector<54x256xbf16>
    %c0_21 = arith.constant 0 : index
    %c0_22 = arith.constant 0 : index
    %43 = vector.load %arg10[%c0_21, %c0_22] : memref<54x13xf32, #tpu.memory_space<vmem>>, vector<54x13xf32>
    %c0_23 = arith.constant 0 : index
    %c0_24 = arith.constant 0 : index
    %44 = vector.load %arg8[%c0_23, %c0_24] : memref<256x13xbf16, #tpu.memory_space<vmem>>, vector<256x13xbf16>
    %cst_25 = arith.constant dense<0.000000e+00> : vector<54x13xf32>
    %45 = tpu.matmul %42, %44, %cst_25 {dimension_numbers = #tpu.dot_dimension_numbers<[1], [0], [0], [1], [0, 0, 1, 1], [], []>} : vector<54x256xbf16>, vector<256x13xbf16>, vector<54x13xf32> -> vector<54x13xf32>
    %46 = arith.addf %43, %45 : vector<54x13xf32>
    %c0_26 = arith.constant 0 : index
    %c0_27 = arith.constant 0 : index
    %47 = vector.load %arg9[%c0_26, %c0_27] : memref<1x13xf32, #tpu.memory_space<vmem>>, vector<1x13xf32>
    %48 = vector.broadcast %47 : vector<1x13xf32> to vector<54x13xf32>
    %49 = arith.addf %46, %48 : vector<54x13xf32>
    %50 = vector.shape_cast %49 : vector<54x13xf32> to vector<1x54x13xf32>
    %c0_28 = arith.constant 0 : index
    %c0_29 = arith.constant 0 : index
    %c0_30 = arith.constant 0 : index
    %51 = vector.load %arg11[%c0_28, %c0_29, %c0_30] : memref<1x54x13xf32, #tpu.memory_space<vmem>>, vector<1x54x13xf32>
    tpu.vector_store %arg11[%c0_28, %c0_29, %c0_30], %50 {strides = array<i32>} : memref<1x54x13xf32, #tpu.memory_space<vmem>>, vector<1x54x13xf32>,
    return
  }
  func.func @transform_0(%arg0: i32) -> (i32, i32, i32) {
    %c0_i32 = arith.constant 0 : i32
    %c0_i32_0 = arith.constant 0 : i32
    %c0_i32_1 = arith.constant 0 : i32
    return %arg0, %c0_i32, %c0_i32_0 : i32, i32, i32
  }
  func.func @transform_1(%arg0: i32) -> (i32, i32) {
    %c0_i32 = arith.constant 0 : i32
    %c0_i32_0 = arith.constant 0 : i32
    %c0_i32_1 = arith.constant 0 : i32
    return %c0_i32, %c0_i32_0 : i32, i32
  }
  func.func @transform_2(%arg0: i32) -> (i32, i32) {
    %c0_i32 = arith.constant 0 : i32
    %c0_i32_0 = arith.constant 0 : i32
    %c0_i32_1 = arith.constant 0 : i32
    return %c0_i32, %c0_i32_0 : i32, i32
  }
  func.func @transform_3(%arg0: i32) -> (i32, i32) {
    %c0_i32 = arith.constant 0 : i32
    %c0_i32_0 = arith.constant 0 : i32
    %c0_i32_1 = arith.constant 0 : i32
    return %c0_i32, %c0_i32_0 : i32, i32
  }
  func.func @transform_4(%arg0: i32) -> (i32, i32) {
    %c0_i32 = arith.constant 0 : i32
    %c0_i32_0 = arith.constant 0 : i32
    %c0_i32_1 = arith.constant 0 : i32
    return %c0_i32, %c0_i32_0 : i32, i32
  }
  func.func @transform_5(%arg0: i32) -> (i32, i32) {
    %c0_i32 = arith.constant 0 : i32
    %c0_i32_0 = arith.constant 0 : i32
    %c0_i32_1 = arith.constant 0 : i32
    return %c0_i32, %c0_i32_0 : i32, i32
  }
  func.func @transform_6(%arg0: i32) -> (i32, i32) {
    %c0_i32 = arith.constant 0 : i32
    %c0_i32_0 = arith.constant 0 : i32
    %c0_i32_1 = arith.constant 0 : i32
    return %c0_i32, %c0_i32_0 : i32, i32
  }
  func.func @transform_7(%arg0: i32) -> (i32, i32) {
    %c0_i32 = arith.constant 0 : i32
    %c0_i32_0 = arith.constant 0 : i32
    %c0_i32_1 = arith.constant 0 : i32
    return %c0_i32, %c0_i32_0 : i32, i32
  }
  func.func @transform_8(%arg0: i32) -> (i32, i32) {
    %c0_i32 = arith.constant 0 : i32
    %c0_i32_0 = arith.constant 0 : i32
    %c0_i32_1 = arith.constant 0 : i32
    return %c0_i32, %c0_i32_0 : i32, i32
  }
  func.func @transform_9(%arg0: i32) -> (i32, i32) {
    %c0_i32 = arith.constant 0 : i32
    %c0_i32_0 = arith.constant 0 : i32
    %c0_i32_1 = arith.constant 0 : i32
    return %c0_i32, %c0_i32_0 : i32, i32
  }
  func.func @transform_10(%arg0: i32) -> (i32, i32, i32) {
    %c0_i32 = arith.constant 0 : i32
    %c0_i32_0 = arith.constant 0 : i32
    %c0_i32_1 = arith.constant 0 : i32
    return %arg0, %c0_i32, %c0_i32_0 : i32, i32, i32
  }
}

</mosaic_0001>

<llo_original>
// kernel: tpu_custom_call.1
$region0: #{tpu_custom_call.1}
  #allocation0 [shape = 'u32[]', space=smem, size = 0x4, offset = 0x4, fixed_abs, tag = 'smem constant byte address 0x4 - core index']
  #allocation1 [shape = 'u32[144,128]{1,0:T(1,128)}', space=vmem, size = 0x12000, scoped, tag = 'internal scratch']
  %s0 = inlined_call_operand.vmem [shape: f32[2,16,128], index: 0, kind: input, shape index: {}]
  %s1 = inlined_call_operand.vmem [shape: bf16[16,128], index: 1, kind: input, shape index: {}]
  %s2 = inlined_call_operand.vmem [shape: f32[1,128], index: 2, kind: input, shape index: {}]
  %s3 = inlined_call_operand.vmem [shape: f32[128,128], index: 3, kind: input, shape index: {}]
  %s4 = inlined_call_operand.vmem [shape: bf16[54,128], index: 4, kind: input, shape index: {}]
  %s5 = inlined_call_operand.vmem [shape: bf16[128,54], index: 5, kind: input, shape index: {}]
  %s6 = inlined_call_operand.vmem [shape: f32[1,54], index: 6, kind: input, shape index: {}]
  %s7 = inlined_call_operand.vmem [shape: bf16[256,13], index: 7, kind: input, shape index: {}]
  %s8 = inlined_call_operand.vmem [shape: f32[1,13], index: 8, kind: input, shape index: {}]
  %s9 = inlined_call_operand.vmem [shape: f32[54,13], index: 9, kind: input, shape index: {}]
  %s10 = inlined_call_operand.vmem [shape: f32[2,54,13], index: 10, kind: output, shape index: {}]
  %s11 = sld [smem:[#allocation0]]
  $region73: #{tpu_custom_call.1} parent=0
    _
  %s13 = ssub.s32 1, %s11
  %s14 = scalar_select 0, %s13, %s11
  loop: start=0, step=1, limit=4
  $region2: #{tpu_custom_call.1} parent=0 // loop_pre_header
    _
  $region3: #{tpu_custom_call.1} parent=0 // loop_header
    %s16 = sphi 0, %s20
    %p17 = scmp.ge.s32.totalorder %s16, 4
    %s26 = sphi 0, %s28
    %s29 = sphi 0, %s26
    %s30 = sphi 0, %s29
    %s46 = sphi 0, %s30
    %s50 = sphi 0, %s50
    %s52 = sphi 0, %s50
    %s53 = sphi 0, %s52
    %s67 = sphi 0, %s53
    %s71 = sphi 0, %s71
    %s73 = sphi 0, %s71
    %s74 = sphi 0, %s73
    %s88 = sphi 0, %s74
    %s92 = sphi 0, %s92
    %s94 = sphi 0, %s92
    %s95 = sphi 0, %s94
    %s109 = sphi 0, %s95
    %s113 = sphi 0, %s113
    %s115 = sphi 0, %s113
    %s116 = sphi 0, %s115
    %s130 = sphi 0, %s116
    %s134 = sphi 0, %s134
    %s136 = sphi 0, %s134
    %s137 = sphi 0, %s136
    %s151 = sphi 0, %s137
    %s155 = sphi 0, %s155
    %s157 = sphi 0, %s155
    %s158 = sphi 0, %s157
    %s172 = sphi 0, %s158
    %s176 = sphi 0, %s176
    %s178 = sphi 0, %s176
    %s179 = sphi 0, %s178
    %s193 = sphi 0, %s179
    %s197 = sphi 0, %s197
    %s199 = sphi 0, %s197
    %s200 = sphi 0, %s199
    %s214 = sphi 0, %s200
    %s218 = sphi 0, %s218
    %s220 = sphi 0, %s218
    %s221 = sphi 0, %s220
    %s235 = sphi 0, %s221
    %s241 = sphi 0, %s243
    %s244 = sphi 0, %s241
    %s245 = sphi 0, %s244
    %s261 = sphi 0, %s245
  $region4: #{tpu_custom_call.1} parent=0 // loop_header_branch
    %19 = sbr.rel (%p17) target = $region8
  $region5: #{tpu_custom_call.1} parent=0 // loop_body
    %s21 = ssub.s32 %s16, 1
    %s22 = ssub.s32 %s16, 2
    %s23 = sadd.s32 %s16, 1
    %s24 = ssub.s32 %s16, %s23
    %p25 = scmp.eq.s32.totalorder %s24, 0
    %s27 = sadd.s32 %s26, 1
    %s28 = scalar_select %p25, %s26, %s27
    %p31 = pneg %p25
    %p32 = scmp.eq.s32.totalorder %s16, 1
    %p33 = por %p31, %p32
    %p34 = scmp.ne.s32.totalorder %s26, %s29
    %p35 = scmp.eq.s32.totalorder %s16, 0
    %p36 = por %p34, %p35
    %p37 = scmp.ne.s32.totalorder %s26, %s29
    %p38 = scmp.eq.s32.totalorder %s21, 1
    %p39 = por %p37, %p38
    %p40 = scmp.ne.s32.totalorder %s29, %s30
    %p41 = scmp.eq.s32.totalorder %s21, 0
    %p42 = por %p40, %p41
    %p43 = scmp.ne.s32.totalorder %s29, %s30
    %p44 = scmp.eq.s32.totalorder %s22, 1
    %p45 = por %p43, %p44
    %p47 = scmp.ne.s32.totalorder %s30, %s46
    %p48 = scmp.eq.s32.totalorder %s22, 0
    %p49 = por %p47, %p48
    %s51 = sadd.s32 %s50, 1
    %p54 = scmp.eq.s32.totalorder %s16, 1
    %p55 = scmp.ne.s32.totalorder %s50, %s52
    %p56 = scmp.eq.s32.totalorder %s16, 0
    %p57 = por %p55, %p56
    %p58 = scmp.ne.s32.totalorder %s50, %s52
    %p59 = scmp.eq.s32.totalorder %s21, 1
    %p60 = por %p58, %p59
    %p61 = scmp.ne.s32.totalorder %s52, %s53
    %p62 = scmp.eq.s32.totalorder %s21, 0
    %p63 = por %p61, %p62
    %p64 = scmp.ne.s32.totalorder %s52, %s53
    %p65 = scmp.eq.s32.totalorder %s22, 1
    %p66 = por %p64, %p65
    %p68 = scmp.ne.s32.totalorder %s53, %s67
    %p69 = scmp.eq.s32.totalorder %s22, 0
    %p70 = por %p68, %p69
    %s72 = sadd.s32 %s71, 1
    %p75 = scmp.eq.s32.totalorder %s16, 1
    %p76 = scmp.ne.s32.totalorder %s71, %s73
    %p77 = scmp.eq.s32.totalorder %s16, 0
    %p78 = por %p76, %p77
    %p79 = scmp.ne.s32.totalorder %s71, %s73
    %p80 = scmp.eq.s32.totalorder %s21, 1
    %p81 = por %p79, %p80
    %p82 = scmp.ne.s32.totalorder %s73, %s74
    %p83 = scmp.eq.s32.totalorder %s21, 0
    %p84 = por %p82, %p83
    %p85 = scmp.ne.s32.totalorder %s73, %s74
    %p86 = scmp.eq.s32.totalorder %s22, 1
    %p87 = por %p85, %p86
    %p89 = scmp.ne.s32.totalorder %s74, %s88
    %p90 = scmp.eq.s32.totalorder %s22, 0
    %p91 = por %p89, %p90
    %s93 = sadd.s32 %s92, 1
    %p96 = scmp.eq.s32.totalorder %s16, 1
    %p97 = scmp.ne.s32.totalorder %s92, %s94
    %p98 = scmp.eq.s32.totalorder %s16, 0
    %p99 = por %p97, %p98
    %p100 = scmp.ne.s32.totalorder %s92, %s94
    %p101 = scmp.eq.s32.totalorder %s21, 1
    %p102 = por %p100, %p101
    %p103 = scmp.ne.s32.totalorder %s94, %s95
    %p104 = scmp.eq.s32.totalorder %s21, 0
    %p105 = por %p103, %p104
    %p106 = scmp.ne.s32.totalorder %s94, %s95
    %p107 = scmp.eq.s32.totalorder %s22, 1
    %p108 = por %p106, %p107
    %p110 = scmp.ne.s32.totalorder %s95, %s109
    %p111 = scmp.eq.s32.totalorder %s22, 0
    %p112 = por %p110, %p111
    %s114 = sadd.s32 %s113, 1
    %p117 = scmp.eq.s32.totalorder %s16, 1
    %p118 = scmp.ne.s32.totalorder %s113, %s115
    %p119 = scmp.eq.s32.totalorder %s16, 0
    %p120 = por %p118, %p119
    %p121 = scmp.ne.s32.totalorder %s113, %s115
    %p122 = scmp.eq.s32.totalorder %s21, 1
    %p123 = por %p121, %p122
    %p124 = scmp.ne.s32.totalorder %s115, %s116
    %p125 = scmp.eq.s32.totalorder %s21, 0
    %p126 = por %p124, %p125
    %p127 = scmp.ne.s32.totalorder %s115, %s116
    %p128 = scmp.eq.s32.totalorder %s22, 1
    %p129 = por %p127, %p128
    %p131 = scmp.ne.s32.totalorder %s116, %s130
    %p132 = scmp.eq.s32.totalorder %s22, 0
    %p133 = por %p131, %p132
    %s135 = sadd.s32 %s134, 1
    %p138 = scmp.eq.s32.totalorder %s16, 1
    %p139 = scmp.ne.s32.totalorder %s134, %s136
    %p140 = scmp.eq.s32.totalorder %s16, 0
    %p141 = por %p139, %p140
    %p142 = scmp.ne.s32.totalorder %s134, %s136
    %p143 = scmp.eq.s32.totalorder %s21, 1
    %p144 = por %p142, %p143
    %p145 = scmp.ne.s32.totalorder %s136, %s137
    %p146 = scmp.eq.s32.totalorder %s21, 0
    %p147 = por %p145, %p146
    %p148 = scmp.ne.s32.totalorder %s136, %s137
    %p149 = scmp.eq.s32.totalorder %s22, 1
    %p150 = por %p148, %p149
    %p152 = scmp.ne.s32.totalorder %s137, %s151
    %p153 = scmp.eq.s32.totalorder %s22, 0
    %p154 = por %p152, %p153
    %s156 = sadd.s32 %s155, 1
    %p159 = scmp.eq.s32.totalorder %s16, 1
    %p160 = scmp.ne.s32.totalorder %s155, %s157
    %p161 = scmp.eq.s32.totalorder %s16, 0
    %p162 = por %p160, %p161
    %p163 = scmp.ne.s32.totalorder %s155, %s157
    %p164 = scmp.eq.s32.totalorder %s21, 1
    %p165 = por %p163, %p164
    %p166 = scmp.ne.s32.totalorder %s157, %s158
    %p167 = scmp.eq.s32.totalorder %s21, 0
    %p168 = por %p166, %p167
    %p169 = scmp.ne.s32.totalorder %s157, %s158
    %p170 = scmp.eq.s32.totalorder %s22, 1
    %p171 = por %p169, %p170
    %p173 = scmp.ne.s32.totalorder %s158, %s172
    %p174 = scmp.eq.s32.totalorder %s22, 0
    %p175 = por %p173, %p174
    %s177 = sadd.s32 %s176, 1
    %p180 = scmp.eq.s32.totalorder %s16, 1
    %p181 = scmp.ne.s32.totalorder %s176, %s178
    %p182 = scmp.eq.s32.totalorder %s16, 0
    %p183 = por %p181, %p182
    %p184 = scmp.ne.s32.totalorder %s176, %s178
    %p185 = scmp.eq.s32.totalorder %s21, 1
    %p186 = por %p184, %p185
    %p187 = scmp.ne.s32.totalorder %s178, %s179
    %p188 = scmp.eq.s32.totalorder %s21, 0
    %p189 = por %p187, %p188
    %p190 = scmp.ne.s32.totalorder %s178, %s179
    %p191 = scmp.eq.s32.totalorder %s22, 1
    %p192 = por %p190, %p191
    %p194 = scmp.ne.s32.totalorder %s179, %s193
    %p195 = scmp.eq.s32.totalorder %s22, 0
    %p196 = por %p194, %p195
    %s198 = sadd.s32 %s197, 1
    %p201 = scmp.eq.s32.totalorder %s16, 1
    %p202 = scmp.ne.s32.totalorder %s197, %s199
    %p203 = scmp.eq.s32.totalorder %s16, 0
    %p204 = por %p202, %p203
    %p205 = scmp.ne.s32.totalorder %s197, %s199
    %p206 = scmp.eq.s32.totalorder %s21, 1
    %p207 = por %p205, %p206
    %p208 = scmp.ne.s32.totalorder %s199, %s200
    %p209 = scmp.eq.s32.totalorder %s21, 0
    %p210 = por %p208, %p209
    %p211 = scmp.ne.s32.totalorder %s199, %s200
    %p212 = scmp.eq.s32.totalorder %s22, 1
    %p213 = por %p211, %p212
    %p215 = scmp.ne.s32.totalorder %s200, %s214
    %p216 = scmp.eq.s32.totalorder %s22, 0
    %p217 = por %p215, %p216
    %s219 = sadd.s32 %s218, 1
    %p222 = scmp.eq.s32.totalorder %s16, 1
    %p223 = scmp.ne.s32.totalorder %s218, %s220
    %p224 = scmp.eq.s32.totalorder %s16, 0
    %p225 = por %p223, %p224
    %p226 = scmp.ne.s32.totalorder %s218, %s220
    %p227 = scmp.eq.s32.totalorder %s21, 1
    %p228 = por %p226, %p227
    %p229 = scmp.ne.s32.totalorder %s220, %s221
    %p230 = scmp.eq.s32.totalorder %s21, 0
    %p231 = por %p229, %p230
    %p232 = scmp.ne.s32.totalorder %s220, %s221
    %p233 = scmp.eq.s32.totalorder %s22, 1
    %p234 = por %p232, %p233
    %p236 = scmp.ne.s32.totalorder %s221, %s235
    %p237 = scmp.eq.s32.totalorder %s22, 0
    %p238 = por %p236, %p237
    %s239 = ssub.s32 %s16, %s23
    %p240 = scmp.eq.s32.totalorder %s239, 0
    %s242 = sadd.s32 %s241, 1
    %s243 = scalar_select %p240, %s241, %s242
    %p246 = pneg %p240
    %p247 = scmp.eq.s32.totalorder %s16, 1
    %p248 = por %p246, %p247
    %p249 = scmp.ne.s32.totalorder %s241, %s244
    %p250 = scmp.eq.s32.totalorder %s16, 0
    %p251 = por %p249, %p250
    %p252 = scmp.ne.s32.totalorder %s241, %s244
    %p253 = scmp.eq.s32.totalorder %s21, 1
    %p254 = por %p252, %p253
    %p255 = scmp.ne.s32.totalorder %s244, %s245
    %p256 = scmp.eq.s32.totalorder %s21, 0
    %p257 = por %p255, %p256
    %p258 = scmp.ne.s32.totalorder %s244, %s245
    %p259 = scmp.eq.s32.totalorder %s22, 1
    %p260 = por %p258, %p259
    %p262 = scmp.ne.s32.totalorder %s245, %s261
    %p263 = scmp.eq.s32.totalorder %s22, 0
    %p264 = por %p262, %p263
    %p265 = scmp.le.s32.totalorder 1, %s16
    %p266 = scmp.lt.s32.totalorder %s16, 3
    %p267 = pnand %p265, %p266
    %p268 = pneg %p267
    // Predicated region
    $region9: #{tpu_custom_call.1} parent=5 // pred_check
      _
    $region10: #{tpu_custom_call.1} parent=5 // pred_check_branch
      %270 = sbr.rel (%p267) target = $region12
    $region11: #{tpu_custom_call.1} parent=5 // pred_region
      %s271 = ssub.s32 %s16, 1
      // Predicated region
      $region13: #{tpu_custom_call.1} parent=11 // pred_check
        %p272 = pneg %p63
      $region14: #{tpu_custom_call.1} parent=11 // pred_check_branch
        %274 = sbr.rel (%p272) target = $region16
      $region15: #{tpu_custom_call.1} parent=11 // pred_region
        _
      $region16: #{tpu_custom_call.1} parent=11 // pred_fallthru
        _
      // Predicated region
      $region17: #{tpu_custom_call.1} parent=11 // pred_check
        %p275 = pneg %p84
      $region18: #{tpu_custom_call.1} parent=11 // pred_check_branch
        %277 = sbr.rel (%p275) target = $region20
      $region19: #{tpu_custom_call.1} parent=11 // pred_region
        _
      $region20: #{tpu_custom_call.1} parent=11 // pred_fallthru
        _
      // Predicated region
      $region21: #{tpu_custom_call.1} parent=11 // pred_check
        %p278 = pneg %p105
      $region22: #{tpu_custom_call.1} parent=11 // pred_check_branch
        %280 = sbr.rel (%p278) target = $region24
      $region23: #{tpu_custom_call.1} parent=11 // pred_region
        _
      $region24: #{tpu_custom_call.1} parent=11 // pred_fallthru
        _
      // Predicated region
      $region25: #{tpu_custom_call.1} parent=11 // pred_check
        %p281 = pneg %p126
      $region26: #{tpu_custom_call.1} parent=11 // pred_check_branch
        %283 = sbr.rel (%p281) target = $region28
      $region27: #{tpu_custom_call.1} parent=11 // pred_region
        _
      $region28: #{tpu_custom_call.1} parent=11 // pred_fallthru
        _
      // Predicated region
      $region29: #{tpu_custom_call.1} parent=11 // pred_check
        %p284 = pneg %p147
      $region30: #{tpu_custom_call.1} parent=11 // pred_check_branch
        %286 = sbr.rel (%p284) target = $region32
      $region31: #{tpu_custom_call.1} parent=11 // pred_region
        _
      $region32: #{tpu_custom_call.1} parent=11 // pred_fallthru
        _
      // Predicated region
      $region33: #{tpu_custom_call.1} parent=11 // pred_check
        %p287 = pneg %p168
      $region34: #{tpu_custom_call.1} parent=11 // pred_check_branch
        %289 = sbr.rel (%p287) target = $region36
      $region35: #{tpu_custom_call.1} parent=11 // pred_region
        _
      $region36: #{tpu_custom_call.1} parent=11 // pred_fallthru
        _
      // Predicated region
      $region37: #{tpu_custom_call.1} parent=11 // pred_check
        %p290 = pneg %p189
      $region38: #{tpu_custom_call.1} parent=11 // pred_check_branch
        %292 = sbr.rel (%p290) target = $region40
      $region39: #{tpu_custom_call.1} parent=11 // pred_region
        _
      $region40: #{tpu_custom_call.1} parent=11 // pred_fallthru
        _
      // Predicated region
      $region41: #{tpu_custom_call.1} parent=11 // pred_check
        %p293 = pneg %p210
      $region42: #{tpu_custom_call.1} parent=11 // pred_check_branch
        %295 = sbr.rel (%p293) target = $region44
      $region43: #{tpu_custom_call.1} parent=11 // pred_region
        _
      $region44: #{tpu_custom_call.1} parent=11 // pred_fallthru
        _
      // Predicated region
      $region45: #{tpu_custom_call.1} parent=11 // pred_check
        %p296 = pneg %p231
      $region46: #{tpu_custom_call.1} parent=11 // pred_check_branch
        %298 = sbr.rel (%p296) target = $region48
      $region47: #{tpu_custom_call.1} parent=11 // pred_region
        _
      $region48: #{tpu_custom_call.1} parent=11 // pred_fallthru
        _
    $region12: #{tpu_custom_call.1} parent=5 // pred_fallthru
      _
    %p299 = scmp.lt.s32.totalorder %s16, 2
    // Predicated region
    $region49: #{tpu_custom_call.1} parent=5 // pred_check
      %p300 = pneg %p299
    $region50: #{tpu_custom_call.1} parent=5 // pred_check_branch
      %302 = sbr.rel (%p300) target = $region52
    $region51: #{tpu_custom_call.1} parent=5 // pred_region
      // Predicated region
      $region53: #{tpu_custom_call.1} parent=51 // pred_check
        %p303 = pneg %p36
      $region54: #{tpu_custom_call.1} parent=51 // pred_check_branch
        %305 = sbr.rel (%p303) target = $region56
      $region55: #{tpu_custom_call.1} parent=51 // pred_region
        %p306 = scmp.lt.s32.totalorder %s16, 1
        %s307 = scalar_select %p306, %s16, 1
        %s308 = smul.addr %s307, 2
        %s309 = smul.addr %s308, 8
        %s310 = scalar_lea.vmem %s0, %s309
      $region56: #{tpu_custom_call.1} parent=51 // pred_fallthru
        _
    $region52: #{tpu_custom_call.1} parent=5 // pred_fallthru
      _
    %p311 = scmp.le.s32.totalorder 1, %s16
    %p312 = scmp.lt.s32.totalorder %s16, 3
    %p313 = pnand %p311, %p312
    %p314 = pneg %p313
    // Predicated region
    $region57: #{tpu_custom_call.1} parent=5 // pred_check
      _
    $region58: #{tpu_custom_call.1} parent=5 // pred_check_branch
      %316 = sbr.rel (%p313) target = $region60
    $region59: #{tpu_custom_call.1} parent=5 // pred_region
      %s317 = ssub.s32 %s16, 1
      %p318 = scmp.lt.s32.totalorder %s21, 1
      %s319 = scalar_select %p318, %s21, 1
      %s320 = smul.addr %s319, 2
      %s321 = smul.addr %s320, 8
      %s322 = scalar_lea.vmem %s0, %s321
      %p323 = pneg %p42
      %p324 = pneg %p39
      %p325 = pneg %p63
      %p326 = pneg %p60
      %p327 = pneg %p84
      %p328 = pneg %p81
      %p329 = pneg %p105
      %p330 = pneg %p102
      %p331 = pneg %p126
      %p332 = pneg %p123
      %p333 = pneg %p147
      %p334 = pneg %p144
      %p335 = pneg %p168
      %p336 = pneg %p165
      %p337 = pneg %p189
      %p338 = pneg %p186
      %p339 = pneg %p210
      %p340 = pneg %p207
      %p341 = pneg %p231
      %p342 = pneg %p228
      %p343 = pneg %p257
      %p344 = pneg %p254
      %p345 = scmp.lt.s32.totalorder %s21, 1
      %s346 = scalar_select %p345, %s21, 1
      %s347 = smul.addr %s346, 7
      %s348 = smul.addr %s347, 8
      %s349 = scalar_lea.vmem %s10, %s348
      %p350 = scmp.lt.s32.totalorder %s21, 1
      %s351 = scalar_select %p350, %s21, 1
      %s352 = smul.addr %s351, 2
      %s353 = smul.addr %s352, 8
      %s354 = scalar_lea.vmem %s0, %s353
      %p355 = scmp.lt.s32.totalorder %s21, 1
      %s356 = scalar_select %p355, %s21, 1
      %s357 = smul.addr %s356, 7
      %s358 = smul.addr %s357, 8
      %s359 = scalar_lea.vmem %s10, %s358
      %v361 = vld [vmem:[%s354] sm:$0xff]
      %v362 = vld [vmem:[%s354 + $0x8] sm:$0xff]
      %363 = vxpose.xlu0.b32.start [1/16] %v361, 128
      %364 = vxpose.xlu0.b32.cont [2/16] %v362, 128
      %365 = vxpose.xlu0.b32.cont [3/16] 0.0, 128
      %366 = vxpose.xlu0.b32.cont [4/16] 0.0, 128
      %367 = vxpose.xlu0.b32.cont [5/16] 0.0, 128
      %368 = vxpose.xlu0.b32.cont [6/16] 0.0, 128
      %369 = vxpose.xlu0.b32.cont [7/16] 0.0, 128
      %370 = vxpose.xlu0.b32.cont [8/16] 0.0, 128
      %371 = vxpose.xlu0.b32.cont [9/16] 0.0, 128
      %372 = vxpose.xlu0.b32.cont [10/16] 0.0, 128
      %373 = vxpose.xlu0.b32.cont [11/16] 0.0, 128
      %374 = vxpose.xlu0.b32.cont [12/16] 0.0, 128
      %375 = vxpose.xlu0.b32.cont [13/16] 0.0, 128
      %376 = vxpose.xlu0.b32.cont [14/16] 0.0, 128
      %377 = vxpose.xlu0.b32.cont [15/16] 0.0, 128
      %378 = vxpose.xlu0.b32.end [16/16] 0.0, 128
      %v379 = vpop.trf.xlu0
      %v380 = vpop.trf.xlu0
      %v381 = vpop.trf.xlu0
      %v382 = vpop.trf.xlu0
      %v383 = vpop.trf.xlu0
      %v384 = vpop.trf.xlu0
      %v385 = vpop.trf.xlu0
      %v386 = vpop.trf.xlu0
      %v387 = vpop.trf.xlu0
      %v388 = vpop.trf.xlu0
      %v389 = vpop.trf.xlu0
      %v390 = vpop.trf.xlu0
      %v391 = vpop.trf.xlu0
      %v392 = vpop.trf.xlu0
      %v393 = vpop.trf.xlu0
      %v394 = vpop.trf.xlu0
      %v395 = vpack.c.bf16 %v380, %v379
      %v396 = vpack.c.bf16 %v382, %v381
      %v397 = vpack.c.bf16 %v384, %v383
      %v398 = vpack.c.bf16 %v386, %v385
      %v399 = vpack.c.bf16 %v388, %v387
      %v400 = vpack.c.bf16 %v390, %v389
      %v401 = vpack.c.bf16 %v392, %v391
      %v402 = vpack.c.bf16 %v394, %v393
      %v403 = vld [vmem:[%s1] sm:$0xf]
      %v404 = vld [vmem:[%s1 + $0x4] sm:$0xf]
      %v405 = vld [vmem:[%s2] sm:$0x1]
      %v407 = vlaneseq
      %v408 = vshrl.u32 %v407, 7
      %v409 = vsub.s32 0, %v408
      %v410 = vrot.slane %v405, %v409
      %v414 = vunpack.c.l.b16 %v403
      %v415 = vunpack.c.l.b16 %v404
      %v416 = vpack.c.b16 %v415, %v414
      %vm418 = vcmask 130048
      %v420 = vsel %vm418, %v395, 0
      %v423 = vsel %vm418, %v396, 0
      %v426 = vsel %vm418, %v397, 0
      %v429 = vsel %vm418, %v398, 0
      %v432 = vsel %vm418, %v399, 0
      %v435 = vsel %vm418, %v400, 0
      %v438 = vsel %vm418, %v401, 0
      %v441 = vsel %vm418, %v402, 0
      %443 = vmatprep.subr.bf16.mxu0 0
      %444 = vmatpush1.bf16.msra.mxu0 %v416
      %445 = vmatprep.subr.bf16.mxu0 0
      %446 = vmatpush1.bf16.msra.mxu0 0
      %447 = vmatprep.subr.bf16.mxu0 0
      %448 = vmatpush1.bf16.msra.mxu0 0
      %449 = vmatprep.subr.bf16.mxu0 0
      %450 = vmatpush1.bf16.msra.mxu0 0
      %451 = vmatprep.subr.bf16.mxu0 0
      %452 = vmatpush1.bf16.msra.mxu0 0
      %453 = vmatprep.subr.bf16.mxu0 0
      %454 = vmatpush1.bf16.msra.mxu0 0
      %455 = vmatprep.subr.bf16.mxu0 0
      %456 = vmatpush1.bf16.msra.mxu0 0
      %457 = vmatprep.subr.bf16.mxu0 0
      %458 = vmatpush1.bf16.msra.mxu0 0
      %459 = vmatprep.subr.bf16.mxu0 0
      %460 = vmatpush1.bf16.msra.mxu0 0
      %461 = vmatprep.subr.bf16.mxu0 0
      %462 = vmatpush1.bf16.msra.mxu0 0
      %463 = vmatprep.subr.bf16.mxu0 0
      %464 = vmatpush1.bf16.msra.mxu0 0
      %465 = vmatprep.subr.bf16.mxu0 0
      %466 = vmatpush1.bf16.msra.mxu0 0
      %467 = vmatprep.subr.bf16.mxu0 0
      %468 = vmatpush1.bf16.msra.mxu0 0
      %469 = vmatprep.subr.bf16.mxu0 0
      %470 = vmatpush1.bf16.msra.mxu0 0
      %471 = vmatprep.subr.bf16.mxu0 0
      %472 = vmatpush1.bf16.msra.mxu0 0
      %473 = vmatprep.subr.bf16.mxu0 0
      %474 = vmatpush1.bf16.msra.mxu0 0
      %475 = vmatprep.mubr.bf16.mxu0 0
      %476 = vmatmul.mubr.bf16.gmra.mrb[0].mxu0 %v420
      %v477 = vpop.f32.mrb[0].mxu0
      %v478 = vadd.f32 %v410, %v477
      %v479 = vpop.f32.mrb[0].mxu0
      %v480 = vpop.f32.mrb[0].mxu0
      %v481 = vadd.f32 %v410, %v480
      %v482 = vpop.f32.mrb[0].mxu0
      %483 = vmatprep.mubr.bf16.mxu0 0
      %484 = vmatmul.mubr.bf16.gmra.mrb[0].mxu0 %v423
      %v485 = vpop.f32.mrb[0].mxu0
      %v486 = vadd.f32 %v410, %v485
      %v487 = vpop.f32.mrb[0].mxu0
      %v488 = vpop.f32.mrb[0].mxu0
      %v489 = vadd.f32 %v410, %v488
      %v490 = vpop.f32.mrb[0].mxu0
      %491 = vmatprep.mubr.bf16.mxu0 0
      %492 = vmatmul.mubr.bf16.gmra.mrb[0].mxu0 %v426
      %v493 = vpop.f32.mrb[0].mxu0
      %v494 = vadd.f32 %v410, %v493
      %v495 = vpop.f32.mrb[0].mxu0
      %v496 = vpop.f32.mrb[0].mxu0
      %v497 = vadd.f32 %v410, %v496
      %v498 = vpop.f32.mrb[0].mxu0
      %499 = vmatprep.mubr.bf16.mxu0 0
      %500 = vmatmul.mubr.bf16.gmra.mrb[0].mxu0 %v429
      %v501 = vpop.f32.mrb[0].mxu0
      %v502 = vadd.f32 %v410, %v501
      %v503 = vpop.f32.mrb[0].mxu0
      %v504 = vpop.f32.mrb[0].mxu0
      %v505 = vadd.f32 %v410, %v504
      %v506 = vpop.f32.mrb[0].mxu0
      %507 = vmatprep.mubr.bf16.mxu0 0
      %508 = vmatmul.mubr.bf16.gmra.mrb[0].mxu0 %v432
      %v509 = vpop.f32.mrb[0].mxu0
      %v510 = vadd.f32 %v410, %v509
      %v511 = vpop.f32.mrb[0].mxu0
      %v512 = vpop.f32.mrb[0].mxu0
      %v513 = vadd.f32 %v410, %v512
      %v514 = vpop.f32.mrb[0].mxu0
      %515 = vmatprep.mubr.bf16.mxu0 0
      %516 = vmatmul.mubr.bf16.gmra.mrb[0].mxu0 %v435
      %v517 = vpop.f32.mrb[0].mxu0
      %v518 = vadd.f32 %v410, %v517
      %v519 = vpop.f32.mrb[0].mxu0
      %v520 = vpop.f32.mrb[0].mxu0
      %v521 = vadd.f32 %v410, %v520
      %v522 = vpop.f32.mrb[0].mxu0
      %523 = vmatprep.mubr.bf16.mxu0 0
      %524 = vmatmul.mubr.bf16.gmra.mrb[0].mxu0 %v438
      %v525 = vpop.f32.mrb[0].mxu0
      %v526 = vadd.f32 %v410, %v525
      %v527 = vpop.f32.mrb[0].mxu0
      %v528 = vpop.f32.mrb[0].mxu0
      %v529 = vadd.f32 %v410, %v528
      %v530 = vpop.f32.mrb[0].mxu0
      %531 = vmatprep.mubr.bf16.mxu0 0
      %532 = vmatmul.mubr.bf16.gmra.mrb[0].mxu0 %v441
      %v533 = vpop.f32.mrb[0].mxu0
      %v534 = vadd.f32 %v410, %v533
      %v535 = vpop.f32.mrb[0].mxu0
      %v536 = vpop.f32.mrb[0].mxu0
      %v537 = vadd.f32 %v410, %v536
      %v538 = vpop.f32.mrb[0].mxu0
      %539 = vdwg.mxu0
      %v540 = vld [vmem:[%s3] sm:$0xff]
      %v541 = vld [vmem:[%s3 + $0x8] sm:$0xff]
      %v542 = vld [vmem:[%s3 + $0x10] sm:$0xff]
      %v543 = vld [vmem:[%s3 + $0x18] sm:$0xff]
      %v544 = vld [vmem:[%s3 + $0x20] sm:$0xff]
      %v545 = vld [vmem:[%s3 + $0x28] sm:$0xff]
      %v546 = vld [vmem:[%s3 + $0x30] sm:$0xff]
      %v547 = vld [vmem:[%s3 + $0x38] sm:$0xff]
      %v548 = vld [vmem:[%s3 + $0x40] sm:$0xff]
      %v549 = vld [vmem:[%s3 + $0x48] sm:$0xff]
      %v550 = vld [vmem:[%s3 + $0x50] sm:$0xff]
      %v551 = vld [vmem:[%s3 + $0x58] sm:$0xff]
      %v552 = vld [vmem:[%s3 + $0x60] sm:$0xff]
      %v553 = vld [vmem:[%s3 + $0x68] sm:$0xff]
      %v554 = vld [vmem:[%s3 + $0x70] sm:$0xff]
      %v555 = vld [vmem:[%s3 + $0x78] sm:$0xff]
      %v556 = vmul.f32 %v478, %v540
      %v557 = vmul.f32 %v481, %v541
      %v558 = vmul.f32 %v486, %v542
      %v559 = vmul.f32 %v489, %v543
      %v560 = vmul.f32 %v494, %v544
      %v561 = vmul.f32 %v497, %v545
      %v562 = vmul.f32 %v502, %v546
      %v563 = vmul.f32 %v505, %v547
      %v564 = vmul.f32 %v510, %v548
      %v565 = vmul.f32 %v513, %v549
      %v566 = vmul.f32 %v518, %v550
      %v567 = vmul.f32 %v521, %v551
      %v568 = vmul.f32 %v526, %v552
      %v569 = vmul.f32 %v529, %v553
      %v570 = vmul.f32 %v534, %v554
      %v571 = vmul.f32 %v537, %v555
      %v572 = vpack.c.bf16 %v557, %v556
      %v573 = vpack.c.bf16 %v559, %v558
      %v574 = vpack.c.bf16 %v561, %v560
      %v575 = vpack.c.bf16 %v563, %v562
      %v576 = vpack.c.bf16 %v565, %v564
      %v577 = vpack.c.bf16 %v567, %v566
      %v578 = vpack.c.bf16 %v569, %v568
      %v579 = vpack.c.bf16 %v571, %v570
      %v580 = vld [vmem:[%s4] sm:$0xf]
      %v581 = vld [vmem:[%s4 + $0x4] sm:$0xf]
      %v582 = vld [vmem:[%s4 + $0x8] sm:$0xf]
      %v583 = vld [vmem:[%s4 + $0xc] sm:$0xf]
      %v584 = vld [vmem:[%s4 + $0x10] sm:$0xf]
      %v585 = vld [vmem:[%s4 + $0x14] sm:$0xf]
      %v586 = vld [vmem:[%s4 + $0x18] sm:$0x7]
      %v594 = vunpack.c.l.b16 %v580
      %v595 = vunpack.c.l.b16 %v581
      %v596 = vunpack.c.l.b16 %v582
      %v597 = vunpack.c.l.b16 %v583
      %v598 = vunpack.c.l.b16 %v584
      %v599 = vunpack.c.l.b16 %v585
      %v600 = vunpack.c.l.b16 %v586
      %v601 = vpack.c.b16 %v595, %v594
      %v602 = vpack.c.b16 %v597, %v596
      %v603 = vpack.c.b16 %v599, %v598
      %v604 = vpack.c.b16 %v600, %v600
      %609 = vmatprep.subr.bf16.mxu0 0
      %610 = vmatpush1.bf16.msra.mxu0 %v572
      %611 = vmatprep.subr.bf16.mxu0 0
      %612 = vmatpush1.bf16.msra.mxu0 %v573
      %613 = vmatprep.subr.bf16.mxu0 0
      %614 = vmatpush1.bf16.msra.mxu0 %v574
      %615 = vmatprep.subr.bf16.mxu0 0
      %616 = vmatpush1.bf16.msra.mxu0 %v575
      %617 = vmatprep.subr.bf16.mxu0 0
      %618 = vmatpush1.bf16.msra.mxu0 %v576
      %619 = vmatprep.subr.bf16.mxu0 0
      %620 = vmatpush1.bf16.msra.mxu0 %v577
      %621 = vmatprep.subr.bf16.mxu0 0
      %622 = vmatpush1.bf16.msra.mxu0 %v578
      %623 = vmatprep.subr.bf16.mxu0 0
      %624 = vmatpush1.bf16.msra.mxu0 %v579
      %625 = vmatprep.subr.bf16.mxu0 0
      %626 = vmatpush1.bf16.msra.mxu0 0
      %627 = vmatprep.subr.bf16.mxu0 0
      %628 = vmatpush1.bf16.msra.mxu0 0
      %629 = vmatprep.subr.bf16.mxu0 0
      %630 = vmatpush1.bf16.msra.mxu0 0
      %631 = vmatprep.subr.bf16.mxu0 0
      %632 = vmatpush1.bf16.msra.mxu0 0
      %633 = vmatprep.subr.bf16.mxu0 0
      %634 = vmatpush1.bf16.msra.mxu0 0
      %635 = vmatprep.subr.bf16.mxu0 0
      %636 = vmatpush1.bf16.msra.mxu0 0
      %637 = vmatprep.subr.bf16.mxu0 0
      %638 = vmatpush1.bf16.msra.mxu0 0
      %639 = vmatprep.subr.bf16.mxu0 0
      %640 = vmatpush1.bf16.msra.mxu0 0
      %641 = vmatprep.mubr.bf16.mxu0 0
      %642 = vmatmul.mubr.bf16.gmra.mrb[0].mxu0 %v601
      %v643 = vpop.f32.mrb[0].mxu0
      %v644 = vadd.f32 0.0, %v643
      %v645 = vpop.f32.mrb[0].mxu0
      %v646 = vpop.f32.mrb[0].mxu0
      %v647 = vadd.f32 0.0, %v646
      %v648 = vpop.f32.mrb[0].mxu0
      %649 = vmatprep.mubr.bf16.mxu0 0
      %650 = vmatmul.mubr.bf16.gmra.mrb[0].mxu0 %v602
      %v651 = vpop.f32.mrb[0].mxu0
      %v652 = vadd.f32 0.0, %v651
      %v653 = vpop.f32.mrb[0].mxu0
      %v654 = vpop.f32.mrb[0].mxu0
      %v655 = vadd.f32 0.0, %v654
      %v656 = vpop.f32.mrb[0].mxu0
      %657 = vmatprep.mubr.bf16.mxu0 0
      %658 = vmatmul.mubr.bf16.gmra.mrb[0].mxu0 %v603
      %v659 = vpop.f32.mrb[0].mxu0
      %v660 = vadd.f32 0.0, %v659
      %v661 = vpop.f32.mrb[0].mxu0
      %v662 = vpop.f32.mrb[0].mxu0
      %v663 = vadd.f32 0.0, %v662
      %v664 = vpop.f32.mrb[0].mxu0
      %665 = vmatprep.mubr.bf16.mxu0 0
      %666 = vmatmul.mubr.bf16.gmra.mrb[0].mxu0 %v604
      %v667 = vpop.f32.mrb[0].mxu0
      %v668 = vadd.f32 0.0, %v667
      %v669 = vpop.f32.mrb[0].mxu0
      %v670 = vpop.f32.mrb[0].mxu0
      %v671 = vpop.f32.mrb[0].mxu0
      %672 = vdwg.mxu0
      %v673 = vpack.c.bf16 %v647, %v644
      %v674 = vpack.c.bf16 %v655, %v652
      %v675 = vpack.c.bf16 %v663, %v660
      %v676 = vpack.c.bf16 %v668, %v668
      %v677 = vld [vmem:[%s5] sm:$0xf]
      %v678 = vld [vmem:[%s5 + $0x4] sm:$0xf]
      %v679 = vld [vmem:[%s5 + $0x8] sm:$0xf]
      %v680 = vld [vmem:[%s5 + $0xc] sm:$0xf]
      %v681 = vld [vmem:[%s5 + $0x10] sm:$0xf]
      %v682 = vld [vmem:[%s5 + $0x14] sm:$0xf]
      %v683 = vld [vmem:[%s5 + $0x18] sm:$0xf]
      %v684 = vld [vmem:[%s5 + $0x1c] sm:$0xf]
      %v685 = vld [vmem:[%s5 + $0x20] sm:$0xf]
      %v686 = vld [vmem:[%s5 + $0x24] sm:$0xf]
      %v687 = vld [vmem:[%s5 + $0x28] sm:$0xf]
      %v688 = vld [vmem:[%s5 + $0x2c] sm:$0xf]
      %v689 = vld [vmem:[%s5 + $0x30] sm:$0xf]
      %v690 = vld [vmem:[%s5 + $0x34] sm:$0xf]
      %v691 = vld [vmem:[%s5 + $0x38] sm:$0xf]
      %v692 = vld [vmem:[%s5 + $0x3c] sm:$0xf]
      %v693 = vld [vmem:[%s6] sm:$0x1]
      %v695 = vlaneseq
      %v696 = vshrl.u32 %v695, 7
      %v697 = vsub.s32 0, %v696
      %v698 = vrot.slane %v693, %v697
      %v716 = vunpack.c.l.b16 %v677
      %v717 = vunpack.c.l.b16 %v678
      %v718 = vunpack.c.l.b16 %v679
      %v719 = vunpack.c.l.b16 %v680
      %v720 = vunpack.c.l.b16 %v681
      %v721 = vunpack.c.l.b16 %v682
      %v722 = vunpack.c.l.b16 %v683
      %v723 = vunpack.c.l.b16 %v684
      %v724 = vunpack.c.l.b16 %v685
      %v725 = vunpack.c.l.b16 %v686
      %v726 = vunpack.c.l.b16 %v687
      %v727 = vunpack.c.l.b16 %v688
      %v728 = vunpack.c.l.b16 %v689
      %v729 = vunpack.c.l.b16 %v690
      %v730 = vunpack.c.l.b16 %v691
      %v731 = vunpack.c.l.b16 %v692
      %v732 = vpack.c.b16 %v717, %v716
      %v733 = vpack.c.b16 %v719, %v718
      %v734 = vpack.c.b16 %v721, %v720
      %v735 = vpack.c.b16 %v723, %v722
      %v736 = vpack.c.b16 %v725, %v724
      %v737 = vpack.c.b16 %v727, %v726
      %v738 = vpack.c.b16 %v729, %v728
      %v739 = vpack.c.b16 %v731, %v730
      %748 = vmatprep.subr.bf16.mxu0 0
      %749 = vmatpush1.bf16.msra.mxu0 %v732
      %750 = vmatprep.subr.bf16.mxu0 0
      %751 = vmatpush1.bf16.msra.mxu0 %v733
      %752 = vmatprep.subr.bf16.mxu0 0
      %753 = vmatpush1.bf16.msra.mxu0 %v734
      %754 = vmatprep.subr.bf16.mxu0 0
      %755 = vmatpush1.bf16.msra.mxu0 %v735
      %756 = vmatprep.subr.bf16.mxu0 0
      %757 = vmatpush1.bf16.msra.mxu0 %v736
      %758 = vmatprep.subr.bf16.mxu0 0
      %759 = vmatpush1.bf16.msra.mxu0 %v737
      %760 = vmatprep.subr.bf16.mxu0 0
      %761 = vmatpush1.bf16.msra.mxu0 %v738
      %762 = vmatprep.subr.bf16.mxu0 0
      %763 = vmatpush1.bf16.msra.mxu0 %v739
      %764 = vmatprep.subr.bf16.mxu0 0
      %765 = vmatpush1.bf16.msra.mxu0 0
      %766 = vmatprep.subr.bf16.mxu0 0
      %767 = vmatpush1.bf16.msra.mxu0 0
      %768 = vmatprep.subr.bf16.mxu0 0
      %769 = vmatpush1.bf16.msra.mxu0 0
      %770 = vmatprep.subr.bf16.mxu0 0
      %771 = vmatpush1.bf16.msra.mxu0 0
      %772 = vmatprep.subr.bf16.mxu0 0
      %773 = vmatpush1.bf16.msra.mxu0 0
      %774 = vmatprep.subr.bf16.mxu0 0
      %775 = vmatpush1.bf16.msra.mxu0 0
      %776 = vmatprep.subr.bf16.mxu0 0
      %777 = vmatpush1.bf16.msra.mxu0 0
      %778 = vmatprep.subr.bf16.mxu0 0
      %779 = vmatpush1.bf16.msra.mxu0 0
      %780 = vmatprep.mubr.bf16.mxu0 0
      %781 = vmatmul.mubr.bf16.gmra.mrb[0].mxu0 %v673
      %v782 = vpop.f32.mrb[0].mxu0
      %v783 = vadd.f32 %v698, %v782
      %v784 = vpop.f32.mrb[0].mxu0
      %v785 = vpop.f32.mrb[0].mxu0
      %v786 = vadd.f32 %v698, %v785
      %v787 = vpop.f32.mrb[0].mxu0
      %788 = vmatprep.mubr.bf16.mxu0 0
      %789 = vmatmul.mubr.bf16.gmra.mrb[0].mxu0 %v674
      %v790 = vpop.f32.mrb[0].mxu0
      %v791 = vadd.f32 %v698, %v790
      %v792 = vpop.f32.mrb[0].mxu0
      %v793 = vpop.f32.mrb[0].mxu0
      %v794 = vadd.f32 %v698, %v793
      %v795 = vpop.f32.mrb[0].mxu0
      %796 = vmatprep.mubr.bf16.mxu0 0
      %797 = vmatmul.mubr.bf16.gmra.mrb[0].mxu0 %v675
      %v798 = vpop.f32.mrb[0].mxu0
      %v799 = vadd.f32 %v698, %v798
      %v800 = vpop.f32.mrb[0].mxu0
      %v801 = vpop.f32.mrb[0].mxu0
      %v802 = vadd.f32 %v698, %v801
      %v803 = vpop.f32.mrb[0].mxu0
      %804 = vmatprep.mubr.bf16.mxu0 0
      %805 = vmatmul.mubr.bf16.gmra.mrb[0].mxu0 %v676
      %v806 = vpop.f32.mrb[0].mxu0
      %v807 = vadd.f32 %v698, %v806
      %v808 = vpop.f32.mrb[0].mxu0
      %v809 = vpop.f32.mrb[0].mxu0
      %v810 = vpop.f32.mrb[0].mxu0
      %811 = vdwg.mxu0
      %vm812 = vcmask 441344
      %v813 = vsel %vm812, %v783, -inf
      %814 = vmax.xlane.f32.xlu0 %v813
      %v815 = vpop.xlane.xlu0 %814
      %v816 = vsel %vm812, %v786, -inf
      %817 = vmax.xlane.f32.xlu0 %v816
      %v818 = vpop.xlane.xlu0 %817
      %v819 = vsel %vm812, %v791, -inf
      %820 = vmax.xlane.f32.xlu0 %v819
      %v821 = vpop.xlane.xlu0 %820
      %v822 = vsel %vm812, %v794, -inf
      %823 = vmax.xlane.f32.xlu0 %v822
      %v824 = vpop.xlane.xlu0 %823
      %v825 = vsel %vm812, %v799, -inf
      %826 = vmax.xlane.f32.xlu0 %v825
      %v827 = vpop.xlane.xlu0 %826
      %v828 = vsel %vm812, %v802, -inf
      %829 = vmax.xlane.f32.xlu0 %v828
      %v830 = vpop.xlane.xlu0 %829
      %vm831 = vcmask 439296
      %v832 = vsel %vm831, %v807, -inf
      %833 = vmax.xlane.f32.xlu0 %v832
      %v834 = vpop.xlane.xlu0 %833
      %v835 = vsub.f32 %v783, %v815
      %v836 = vsub.f32 %v786, %v818
      %v837 = vsub.f32 %v791, %v821
      %v838 = vsub.f32 %v794, %v824
      %v839 = vsub.f32 %v799, %v827
      %v840 = vsub.f32 %v802, %v830
      %v841 = vsub.f32 %v807, %v834
      %v842 = vmul.f32 %v835, 1.442695
      %v843 = vpow.pop %v842
      %v844 = vmul.f32 %v836, 1.442695
      %v845 = vpow.pop %v844
      %v846 = vmul.f32 %v837, 1.442695
      %v847 = vpow.pop %v846
      %v848 = vmul.f32 %v838, 1.442695
      %v849 = vpow.pop %v848
      %v850 = vmul.f32 %v839, 1.442695
      %v851 = vpow.pop %v850
      %v852 = vmul.f32 %v840, 1.442695
      %v853 = vpow.pop %v852
      %v854 = vmul.f32 %v841, 1.442695
      %v855 = vpow.pop %v854
      %v856 = vsel %vm812, %v843, 0.0
      %857 = vadd.xlane.f32.xlu0 %v856
      %v858 = vpop.xlane.xlu0 %857
      %v859 = vsel %vm812, %v845, 0.0
      %860 = vadd.xlane.f32.xlu0 %v859
      %v861 = vpop.xlane.xlu0 %860
      %v862 = vsel %vm812, %v847, 0.0
      %863 = vadd.xlane.f32.xlu0 %v862
      %v864 = vpop.xlane.xlu0 %863
      %v865 = vsel %vm812, %v849, 0.0
      %866 = vadd.xlane.f32.xlu0 %v865
      %v867 = vpop.xlane.xlu0 %866
      %v868 = vsel %vm812, %v851, 0.0
      %869 = vadd.xlane.f32.xlu0 %v868
      %v870 = vpop.xlane.xlu0 %869
      %v871 = vsel %vm812, %v853, 0.0
      %872 = vadd.xlane.f32.xlu0 %v871
      %v873 = vpop.xlane.xlu0 %872
      %v874 = vsel %vm831, %v855, 0.0
      %875 = vadd.xlane.f32.xlu0 %v874
      %v876 = vpop.xlane.xlu0 %875
      %v877 = vrcp.pop %v858
      %v878 = vmul.f32 %v843, %v877
      %v879 = vrcp.pop %v861
      %v880 = vmul.f32 %v845, %v879
      %v881 = vrcp.pop %v864
      %v882 = vmul.f32 %v847, %v881
      %v883 = vrcp.pop %v867
      %v884 = vmul.f32 %v849, %v883
      %v885 = vrcp.pop %v870
      %v886 = vmul.f32 %v851, %v885
      %v887 = vrcp.pop %v873
      %v888 = vmul.f32 %v853, %v887
      %v889 = vrcp.pop %v876
      %v890 = vmul.f32 %v855, %v889
      %898 = vrot.lane.b32.xlu0 %v878, 1
      %v899 = vpop.permute.xlu0 %898
      %900 = vrot.lane.b32.xlu0 %v880, 1
      %v901 = vpop.permute.xlu0 %900
      %902 = vrot.lane.b32.xlu0 %v882, 1
      %v903 = vpop.permute.xlu0 %902
      %904 = vrot.lane.b32.xlu0 %v884, 1
      %v905 = vpop.permute.xlu0 %904
      %906 = vrot.lane.b32.xlu0 %v886, 1
      %v907 = vpop.permute.xlu0 %906
      %908 = vrot.lane.b32.xlu0 %v888, 1
      %v909 = vpop.permute.xlu0 %908
      %910 = vrot.lane.b32.xlu0 %v890, 1
      %v911 = vpop.permute.xlu0 %910
      %vm919 = vcmask 7168
      %v920 = vsel %vm919, 0.0, %v899
      %v921 = vsel %vm919, 0.0, %v901
      %v922 = vsel %vm919, 0.0, %v903
      %v923 = vsel %vm919, 0.0, %v905
      %v924 = vsel %vm919, 0.0, %v907
      %v925 = vsel %vm919, 0.0, %v909
      %v926 = vsel %vm919, 0.0, %v911
      %v927 = vlaneseq
      %v928 = vshrl.u32 %v927, 7
      %v929 = vadd.s32 %v928, 8
      %v930 = vadd.s32 %v928, 16
      %v931 = vadd.s32 %v928, 24
      %v932 = vadd.s32 %v928, 32
      %v933 = vadd.s32 %v928, 40
      %v934 = vadd.s32 %v928, 48
      %v935 = vlaneseq
      %v936 = vand.u32 %v935, 127
      %vm937 = vcmp.lt.s32.totalorder %v936, %v928
      %vm938 = vcmp.lt.s32.totalorder %v936, %v929
      %vm939 = vcmp.lt.s32.totalorder %v936, %v930
      %vm940 = vcmp.lt.s32.totalorder %v936, %v931
      %vm941 = vcmp.lt.s32.totalorder %v936, %v932
      %vm942 = vcmp.lt.s32.totalorder %v936, %v933
      %vm943 = vcmp.lt.s32.totalorder %v936, %v934
      %vm944 = vcmp.gt.s32.totalorder %v936, %v928
      %vm945 = vcmp.gt.s32.totalorder %v936, %v929
      %vm946 = vcmp.gt.s32.totalorder %v936, %v930
      %vm947 = vcmp.gt.s32.totalorder %v936, %v931
      %vm948 = vcmp.gt.s32.totalorder %v936, %v932
      %vm949 = vcmp.gt.s32.totalorder %v936, %v933
      %vm950 = vcmp.gt.s32.totalorder %v936, %v934
      %v951 = vsel %vm944, %v920, 0.0
      %v952 = vsel %vm945, %v921, 0.0
      %v953 = vsel %vm946, %v922, 0.0
      %v954 = vsel %vm947, %v923, 0.0
      %v955 = vsel %vm948, %v924, 0.0
      %v956 = vsel %vm949, %v925, 0.0
      %v957 = vsel %vm950, %v926, 0.0
      %v958 = vsel %vm937, %v878, %v951
      %v959 = vsel %vm938, %v880, %v952
      %v960 = vsel %vm939, %v882, %v953
      %v961 = vsel %vm940, %v884, %v954
      %v962 = vsel %vm941, %v886, %v955
      %v963 = vsel %vm942, %v888, %v956
      %v964 = vsel %vm943, %v890, %v957
      %v965 = vpack.c.bf16 %v959, %v958
      %v966 = vpack.c.bf16 %v961, %v960
      %v967 = vpack.c.bf16 %v963, %v962
      %v968 = vpack.c.bf16 %v964, %v964
      %v970 = vsel %vm812, %v965, 0
      %v973 = vsel %vm812, %v966, 0
      %v976 = vsel %vm812, %v967, 0
      %v979 = vsel %vm812, %v968, 0
      %vm981 = vcmask 1042432
      %v983 = vsel %vm981, %v676, 0
      %985 = vmatprep.subr.bf16.mxu0 0
      %986 = vmatpush1.bf16.msra.mxu0 %v673
      %987 = vmatprep.subr.bf16.mxu0 0
      %988 = vmatpush1.bf16.msra.mxu0 %v674
      %989 = vmatprep.subr.bf16.mxu0 0
      %990 = vmatpush1.bf16.msra.mxu0 %v675
      %991 = vmatprep.subr.bf16.mxu0 0
      %992 = vmatpush1.bf16.msra.mxu0 %v983
      %993 = vmatprep.subr.bf16.mxu0 0
      %994 = vmatpush1.bf16.msra.mxu0 0
      %995 = vmatprep.subr.bf16.mxu0 0
      %996 = vmatpush1.bf16.msra.mxu0 0
      %997 = vmatprep.subr.bf16.mxu0 0
      %998 = vmatpush1.bf16.msra.mxu0 0
      %999 = vmatprep.subr.bf16.mxu0 0
      %1000 = vmatpush1.bf16.msra.mxu0 0
      %1001 = vmatprep.subr.bf16.mxu0 0
      %1002 = vmatpush1.bf16.msra.mxu0 0
      %1003 = vmatprep.subr.bf16.mxu0 0
      %1004 = vmatpush1.bf16.msra.mxu0 0
      %1005 = vmatprep.subr.bf16.mxu0 0
      %1006 = vmatpush1.bf16.msra.mxu0 0
      %1007 = vmatprep.subr.bf16.mxu0 0
      %1008 = vmatpush1.bf16.msra.mxu0 0
      %1009 = vmatprep.subr.bf16.mxu0 0
      %1010 = vmatpush1.bf16.msra.mxu0 0
      %1011 = vmatprep.subr.bf16.mxu0 0
      %1012 = vmatpush1.bf16.msra.mxu0 0
      %1013 = vmatprep.subr.bf16.mxu0 0
      %1014 = vmatpush1.bf16.msra.mxu0 0
      %1015 = vmatprep.subr.bf16.mxu0 0
      %1016 = vmatpush1.bf16.msra.mxu0 0
      %1017 = vmatprep.mubr.bf16.mxu0 0
      %1018 = vmatmul.mubr.bf16.gmra.mrb[0].mxu0 %v970
      %v1019 = vpop.f32.mrb[0].mxu0
      %v1020 = vadd.f32 0.0, %v1019
      %v1021 = vpop.f32.mrb[0].mxu0
      %v1022 = vpop.f32.mrb[0].mxu0
      %v1023 = vadd.f32 0.0, %v1022
      %v1024 = vpop.f32.mrb[0].mxu0
      %1025 = vmatprep.mubr.bf16.mxu0 0
      %1026 = vmatmul.mubr.bf16.gmra.mrb[0].mxu0 %v973
      %v1027 = vpop.f32.mrb[0].mxu0
      %v1028 = vadd.f32 0.0, %v1027
      %v1029 = vpop.f32.mrb[0].mxu0
      %v1030 = vpop.f32.mrb[0].mxu0
      %v1031 = vadd.f32 0.0, %v1030
      %v1032 = vpop.f32.mrb[0].mxu0
      %1033 = vmatprep.mubr.bf16.mxu0 0
      %1034 = vmatmul.mubr.bf16.gmra.mrb[0].mxu0 %v976
      %v1035 = vpop.f32.mrb[0].mxu0
      %v1036 = vadd.f32 0.0, %v1035
      %v1037 = vpop.f32.mrb[0].mxu0
      %v1038 = vpop.f32.mrb[0].mxu0
      %v1039 = vadd.f32 0.0, %v1038
      %v1040 = vpop.f32.mrb[0].mxu0
      %1041 = vmatprep.mubr.bf16.mxu0 0
      %1042 = vmatmul.mubr.bf16.gmra.mrb[0].mxu0 %v979
      %v1043 = vpop.f32.mrb[0].mxu0
      %v1044 = vadd.f32 0.0, %v1043
      %v1045 = vpop.f32.mrb[0].mxu0
      %v1046 = vpop.f32.mrb[0].mxu0
      %v1047 = vpop.f32.mrb[0].mxu0
      %1048 = vdwg.mxu0
      %v1049 = vpack.c.bf16 %v1023, %v1020
      %v1050 = vpack.c.bf16 %v1031, %v1028
      %v1051 = vpack.c.bf16 %v1039, %v1036
      %v1052 = vpack.c.bf16 %v1044, %v1044
      %v1053 = vld [vmem:[%s9] sm:$0xff]
      %v1054 = vld [vmem:[%s9 + $0x8] sm:$0xff]
      %v1055 = vld [vmem:[%s9 + $0x10] sm:$0xff]
      %v1056 = vld [vmem:[%s9 + $0x18] sm:$0xff]
      %v1057 = vld [vmem:[%s9 + $0x20] sm:$0xff]
      %v1058 = vld [vmem:[%s9 + $0x28] sm:$0xff]
      %v1059 = vld [vmem:[%s9 + $0x30] sm:$0x3f]
      %v1060 = vld [vmem:[%s7] sm:$0xf]
      %v1061 = vld [vmem:[%s7 + $0x4] sm:$0xf]
      %v1062 = vld [vmem:[%s7 + $0x8] sm:$0xf]
      %v1063 = vld [vmem:[%s7 + $0xc] sm:$0xf]
      %v1064 = vld [vmem:[%s7 + $0x10] sm:$0xf]
      %v1065 = vld [vmem:[%s7 + $0x14] sm:$0xf]
      %v1066 = vld [vmem:[%s7 + $0x18] sm:$0xf]
      %v1067 = vld [vmem:[%s7 + $0x1c] sm:$0xf]
      %v1068 = vld [vmem:[%s7 + $0x20] sm:$0xf]
      %v1069 = vld [vmem:[%s7 + $0x24] sm:$0xf]
      %v1070 = vld [vmem:[%s7 + $0x28] sm:$0xf]
      %v1071 = vld [vmem:[%s7 + $0x2c] sm:$0xf]
      %v1072 = vld [vmem:[%s7 + $0x30] sm:$0xf]
      %v1073 = vld [vmem:[%s7 + $0x34] sm:$0xf]
      %v1074 = vld [vmem:[%s7 + $0x38] sm:$0xf]
      %v1075 = vld [vmem:[%s7 + $0x3c] sm:$0xf]
      %v1076 = vld [vmem:[%s7 + $0x40] sm:$0xf]
      %v1077 = vld [vmem:[%s7 + $0x44] sm:$0xf]
      %v1078 = vld [vmem:[%s7 + $0x48] sm:$0xf]
      %v1079 = vld [vmem:[%s7 + $0x4c] sm:$0xf]
      %v1080 = vld [vmem:[%s7 + $0x50] sm:$0xf]
      %v1081 = vld [vmem:[%s7 + $0x54] sm:$0xf]
      %v1082 = vld [vmem:[%s7 + $0x58] sm:$0xf]
      %v1083 = vld [vmem:[%s7 + $0x5c] sm:$0xf]
      %v1084 = vld [vmem:[%s7 + $0x60] sm:$0xf]
      %v1085 = vld [vmem:[%s7 + $0x64] sm:$0xf]
      %v1086 = vld [vmem:[%s7 + $0x68] sm:$0xf]
      %v1087 = vld [vmem:[%s7 + $0x6c] sm:$0xf]
      %v1088 = vld [vmem:[%s7 + $0x70] sm:$0xf]
      %v1089 = vld [vmem:[%s7 + $0x74] sm:$0xf]
      %v1090 = vld [vmem:[%s7 + $0x78] sm:$0xf]
      %v1091 = vld [vmem:[%s7 + $0x7c] sm:$0xf]
      %v1124 = vunpack.c.l.b16 %v1060
      %v1125 = vunpack.c.l.b16 %v1061
      %v1126 = vunpack.c.l.b16 %v1062
      %v1127 = vunpack.c.l.b16 %v1063
      %v1128 = vunpack.c.l.b16 %v1064
      %v1129 = vunpack.c.l.b16 %v1065
      %v1130 = vunpack.c.l.b16 %v1066
      %v1131 = vunpack.c.l.b16 %v1067
      %v1132 = vunpack.c.l.b16 %v1068
      %v1133 = vunpack.c.l.b16 %v1069
      %v1134 = vunpack.c.l.b16 %v1070
      %v1135 = vunpack.c.l.b16 %v1071
      %v1136 = vunpack.c.l.b16 %v1072
      %v1137 = vunpack.c.l.b16 %v1073
      %v1138 = vunpack.c.l.b16 %v1074
      %v1139 = vunpack.c.l.b16 %v1075
      %v1140 = vunpack.c.l.b16 %v1076
      %v1141 = vunpack.c.l.b16 %v1077
      %v1142 = vunpack.c.l.b16 %v1078
      %v1143 = vunpack.c.l.b16 %v1079
      %v1144 = vunpack.c.l.b16 %v1080
      %v1145 = vunpack.c.l.b16 %v1081
      %v1146 = vunpack.c.l.b16 %v1082
      %v1147 = vunpack.c.l.b16 %v1083
      %v1148 = vunpack.c.l.b16 %v1084
      %v1149 = vunpack.c.l.b16 %v1085
      %v1150 = vunpack.c.l.b16 %v1086
      %v1151 = vunpack.c.l.b16 %v1087
      %v1152 = vunpack.c.l.b16 %v1088
      %v1153 = vunpack.c.l.b16 %v1089
      %v1154 = vunpack.c.l.b16 %v1090
      %v1155 = vunpack.c.l.b16 %v1091
      %v1156 = vpack.c.b16 %v1125, %v1124
      %v1157 = vpack.c.b16 %v1127, %v1126
      %v1158 = vpack.c.b16 %v1129, %v1128
      %v1159 = vpack.c.b16 %v1131, %v1130
      %v1160 = vpack.c.b16 %v1133, %v1132
      %v1161 = vpack.c.b16 %v1135, %v1134
      %v1162 = vpack.c.b16 %v1137, %v1136
      %v1163 = vpack.c.b16 %v1139, %v1138
      %v1164 = vpack.c.b16 %v1141, %v1140
      %v1165 = vpack.c.b16 %v1143, %v1142
      %v1166 = vpack.c.b16 %v1145, %v1144
      %v1167 = vpack.c.b16 %v1147, %v1146
      %v1168 = vpack.c.b16 %v1149, %v1148
      %v1169 = vpack.c.b16 %v1151, %v1150
      %v1170 = vpack.c.b16 %v1153, %v1152
      %v1171 = vpack.c.b16 %v1155, %v1154
      %1188 = vmatprep.subr.bf16.mxu0 0
      %1189 = vmatpush1.bf16.msra.mxu0 %v1156
      %1190 = vmatprep.subr.bf16.mxu0 0
      %1191 = vmatpush1.bf16.msra.mxu0 %v1157
      %1192 = vmatprep.subr.bf16.mxu0 0
      %1193 = vmatpush1.bf16.msra.mxu0 %v1158
      %1194 = vmatprep.subr.bf16.mxu0 0
      %1195 = vmatpush1.bf16.msra.mxu0 %v1159
      %1196 = vmatprep.subr.bf16.mxu0 0
      %1197 = vmatpush1.bf16.msra.mxu0 %v1160
      %1198 = vmatprep.subr.bf16.mxu0 0
      %1199 = vmatpush1.bf16.msra.mxu0 %v1161
      %1200 = vmatprep.subr.bf16.mxu0 0
      %1201 = vmatpush1.bf16.msra.mxu0 %v1162
      %1202 = vmatprep.subr.bf16.mxu0 0
      %1203 = vmatpush1.bf16.msra.mxu0 %v1163
      %1204 = vmatprep.subr.bf16.mxu0 0
      %1205 = vmatpush1.bf16.msra.mxu0 %v1164
      %1206 = vmatprep.subr.bf16.mxu0 0
      %1207 = vmatpush1.bf16.msra.mxu0 %v1165
      %1208 = vmatprep.subr.bf16.mxu0 0
      %1209 = vmatpush1.bf16.msra.mxu0 %v1166
      %1210 = vmatprep.subr.bf16.mxu0 0
      %1211 = vmatpush1.bf16.msra.mxu0 %v1167
      %1212 = vmatprep.subr.bf16.mxu0 0
      %1213 = vmatpush1.bf16.msra.mxu0 %v1168
      %1214 = vmatprep.subr.bf16.mxu0 0
      %1215 = vmatpush1.bf16.msra.mxu0 %v1169
      %1216 = vmatprep.subr.bf16.mxu0 0
      %1217 = vmatpush1.bf16.msra.mxu0 %v1170
      %1218 = vmatprep.subr.bf16.mxu0 0
      %1219 = vmatpush1.bf16.msra.mxu0 %v1171
      %1220 = vmatprep.mubr.bf16.mxu0 %v673
      %1221 = vmatmul.mubr.bf16.gmra.mrb[0].mxu0 %v1049
      %v1222 = vpop.f32.mrb[0].mxu0
      %v1223 = vadd.f32 0.0, %v1222
      %v1224 = vpop.f32.mrb[0].mxu0
      %v1225 = vpop.f32.mrb[0].mxu0
      %v1226 = vadd.f32 0.0, %v1225
      %v1227 = vpop.f32.mrb[0].mxu0
      %1228 = vmatprep.mubr.bf16.mxu0 %v674
      %1229 = vmatmul.mubr.bf16.gmra.mrb[0].mxu0 %v1050
      %v1230 = vpop.f32.mrb[0].mxu0
      %v1231 = vadd.f32 0.0, %v1230
      %v1232 = vpop.f32.mrb[0].mxu0
      %v1233 = vpop.f32.mrb[0].mxu0
      %v1234 = vadd.f32 0.0, %v1233
      %v1235 = vpop.f32.mrb[0].mxu0
      %1236 = vmatprep.mubr.bf16.mxu0 %v675
      %1237 = vmatmul.mubr.bf16.gmra.mrb[0].mxu0 %v1051
      %v1238 = vpop.f32.mrb[0].mxu0
      %v1239 = vadd.f32 0.0, %v1238
      %v1240 = vpop.f32.mrb[0].mxu0
      %v1241 = vpop.f32.mrb[0].mxu0
      %v1242 = vadd.f32 0.0, %v1241
      %v1243 = vpop.f32.mrb[0].mxu0
      %1244 = vmatprep.mubr.bf16.mxu0 %v676
      %1245 = vmatmul.mubr.bf16.gmra.mrb[0].mxu0 %v1052
      %v1246 = vpop.f32.mrb[0].mxu0
      %v1247 = vadd.f32 0.0, %v1246
      %v1248 = vpop.f32.mrb[0].mxu0
      %v1249 = vpop.f32.mrb[0].mxu0
      %v1250 = vpop.f32.mrb[0].mxu0
      %1251 = vdwg.mxu0
      %v1252 = vadd.f32 %v1053, %v1223
      %v1253 = vadd.f32 %v1054, %v1226
      %v1254 = vadd.f32 %v1055, %v1231
      %v1255 = vadd.f32 %v1056, %v1234
      %v1256 = vadd.f32 %v1057, %v1239
      %v1257 = vadd.f32 %v1058, %v1242
      %v1258 = vadd.f32 %v1059, %v1247
      %v1259 = vld [vmem:[%s8] sm:$0x1]
      %v1261 = vlaneseq
      %v1262 = vshrl.u32 %v1261, 7
      %v1263 = vsub.s32 0, %v1262
      %v1264 = vrot.slane %v1259, %v1263
      %v1266 = vadd.f32 %v1252, %v1264
      %v1267 = vadd.f32 %v1253, %v1264
      %v1268 = vadd.f32 %v1254, %v1264
      %v1269 = vadd.f32 %v1255, %v1264
      %v1270 = vadd.f32 %v1256, %v1264
      %v1271 = vadd.f32 %v1257, %v1264
      %v1272 = vadd.f32 %v1258, %v1264
      %vm1273 = vcmask 105472
      %1274 = vst.msk [vmem:[%s359] sm:$0xff] %vm1273, %v1266
      %1275 = vst.msk [vmem:[%s359 + $0x8] sm:$0xff] %vm1273, %v1267
      %1276 = vst.msk [vmem:[%s359 + $0x10] sm:$0xff] %vm1273, %v1268
      %1277 = vst.msk [vmem:[%s359 + $0x18] sm:$0xff] %vm1273, %v1269
      %1278 = vst.msk [vmem:[%s359 + $0x20] sm:$0xff] %vm1273, %v1270
      %1279 = vst.msk [vmem:[%s359 + $0x28] sm:$0xff] %vm1273, %v1271
      %vm1280 = vcmask 103424
      %1281 = vst.msk [vmem:[%s359 + $0x30] sm:$0x3f] %vm1280, %v1272
      %p1282 = scmp.lt.s32.totalorder %s21, 1
      %s1283 = scalar_select %p1282, %s21, 1
      %s1284 = smul.addr %s1283, 7
      %s1285 = smul.addr %s1284, 8
      %s1286 = scalar_lea.vmem %s10, %s1285
      // Predicated region
      $region61: #{tpu_custom_call.1} parent=59 // pred_check
        %p1287 = pneg %p254
      $region62: #{tpu_custom_call.1} parent=59 // pred_check_branch
        %1289 = sbr.rel (%p1287) target = $region64
      $region63: #{tpu_custom_call.1} parent=59 // pred_region
        _
      $region64: #{tpu_custom_call.1} parent=59 // pred_fallthru
        _
    $region60: #{tpu_custom_call.1} parent=5 // pred_fallthru
      _
    %p1290 = scmp.le.s32.totalorder 2, %s16
    // Predicated region
    $region65: #{tpu_custom_call.1} parent=5 // pred_check
      %p1291 = pneg %p1290
    $region66: #{tpu_custom_call.1} parent=5 // pred_check_branch
      %1293 = sbr.rel (%p1291) target = $region68
    $region67: #{tpu_custom_call.1} parent=5 // pred_region
      %s1294 = ssub.s32 %s16, 2
      // Predicated region
      $region69: #{tpu_custom_call.1} parent=67 // pred_check
        %p1295 = pneg %p260
      $region70: #{tpu_custom_call.1} parent=67 // pred_check_branch
        %1297 = sbr.rel (%p1295) target = $region72
      $region71: #{tpu_custom_call.1} parent=67 // pred_region
        %p1298 = scmp.lt.s32.totalorder %s22, 1
        %s1299 = scalar_select %p1298, %s22, 1
        %s1300 = smul.addr %s1299, 7
        %s1301 = smul.addr %s1300, 8
        %s1302 = scalar_lea.vmem %s10, %s1301
      $region72: #{tpu_custom_call.1} parent=67 // pred_fallthru
        _
    $region68: #{tpu_custom_call.1} parent=5 // pred_fallthru
      _
  $region6: #{tpu_custom_call.1} parent=0 // loop_footer
    %s20 = sadd.s32 1, %s16
  $region7: #{tpu_custom_call.1} parent=0 // loop_footer_branch
    %15 = sbr.rel target = $region3
  $region8: #{tpu_custom_call.1} parent=0 // loop_exit
    _

</llo_original>
